<compile_context>
chip_gen: v7x
topology: tpu7x:2x2x1
jax: 0.10.0
libtpu: 0.0.40
codegen_flags: <defaults>
</compile_context>

<pallas_src>
import jax
import jax.numpy as jnp
from jax import lax
from jax.experimental import pallas as pl
from jax.experimental.pallas import tpu as pltpu


def _pam_flash_kernel(x_q_ref, x_kv_ref, wq_ref, bq_ref, wvk_ref, bvk_ref,
                      gamma_ref, o_ref, q_sc, m_sc, l_sc, acc_sc):
    ki = pl.program_id(2)
    n_kv = pl.num_programs(2)
    C = o_ref.shape[2]          # static: channel count

    # --- init per (b, qi): project q once, reset online-softmax state -------
    @pl.when(ki == 0)
    def _():
        x_q = x_q_ref[0]                                           # (Tq, C) f32
        q = jnp.dot(x_q.astype(jnp.bfloat16), wq_ref[...],
                    preferred_element_type=jnp.float32)            # (Tq, C8)
        q = q + bq_ref[...]                                        # bias in f32
        q_sc[...] = q.astype(jnp.bfloat16)
        m_sc[...] = jnp.full_like(m_sc, -jnp.inf)
        l_sc[...] = jnp.zeros_like(l_sc)
        acc_sc[...] = jnp.zeros_like(acc_sc)

    # --- fused value/key projection for this KV tile (one wide MXU matmul) --
    x_kv = x_kv_ref[0].astype(jnp.bfloat16)                        # (Tk, C)
    vk = jnp.dot(x_kv, wvk_ref[...],
                 preferred_element_type=jnp.float32) + bvk_ref[...]  # (Tk, C+C8)
    v = vk[:, :C].astype(jnp.bfloat16)                             # (Tk, C)
    k = vk[:, C:].astype(jnp.bfloat16)                             # (Tk, C8)

    # --- energy tile: s[i, j] = sum_c8 q[i,c8] * k[j,c8]  -> (Tq, Tk) -------
    s = lax.dot_general(q_sc[...], k, (((1,), (1,)), ((), ())),
                        preferred_element_type=jnp.float32)

    # --- online softmax (f32 on VPU/EUP) ------------------------------------
    m_prev = m_sc[...]
    m_new = jnp.maximum(m_prev, jnp.max(s, axis=-1, keepdims=True))
    alpha = jnp.exp(m_prev - m_new)
    p = jnp.exp(s - m_new)
    l_sc[...] = alpha * l_sc[...] + jnp.sum(p, axis=-1, keepdims=True)
    acc_sc[...] = alpha * acc_sc[...] + jnp.dot(
        p.astype(jnp.bfloat16), v, preferred_element_type=jnp.float32)
    m_sc[...] = m_new

    # --- finalize: normalize, residual, write output block ------------------
    @pl.when(ki == n_kv - 1)
    def _():
        inv_l = pl.reciprocal(l_sc[...], approx=True)
        out = acc_sc[...] * inv_l                                  # (Tq, C) f32
        gamma = gamma_ref[0]                                       # SMEM scalar
        o_ref[0] = (gamma * out + x_q_ref[0]).astype(o_ref.dtype)


def pam_module_forward(x_nchw, wq, bq, wk, bk, wv, bv, gamma, *, tq=256, tk=512):
    """x_nchw: (B, C, H, W) f32.  wq/wk: (C//8, C); wv: (C, C); gamma: (1,)."""
    B, C, H, W = x_nchw.shape
    N = H * W
    C8 = wq.shape[0]

    tq = min(tq, N)
    tk = min(tk, N)
    assert N % tq == 0 and N % tk == 0, "H*W must be divisible by tile sizes"
    assert tq % 8 == 0 and tk % 8 == 0

    # x in (B, N, C): lane-dense channel dim, natural for (T, C) @ (C, Co) matmuls.
    x_bnc = jnp.transpose(x_nchw.reshape(B, C, N), (0, 2, 1))

    # Natural-layout (in, out) projection weights, pre-cast to bf16 for the MXU.
    wq_t = wq.T.astype(jnp.bfloat16)                               # (C, C8)
    # Fused value/key projection: v first so its slice is lane-aligned at 0.
    wvk = jnp.concatenate([wv.T, wk.T], axis=1).astype(jnp.bfloat16)  # (C, C+C8)
    bq_r = bq.reshape(1, C8).astype(jnp.float32)
    bvk = jnp.concatenate([bv, bk]).reshape(1, C + C8).astype(jnp.float32)
    gamma_s = gamma.reshape(1).astype(jnp.float32)

    grid = (B, N // tq, N // tk)

    out_bnc = pl.pallas_call(
        _pam_flash_kernel,
        out_shape=jax.ShapeDtypeStruct((B, N, C), jnp.float32),
        grid_spec=pltpu.PrefetchScalarGridSpec(
            num_scalar_prefetch=0,
            grid=grid,
            in_specs=[
                # query x tile: resident across the KV axis (no re-DMA per ki)
                pl.BlockSpec((1, tq, C), lambda b, qi, ki: (b, qi, 0)),
                # kv x tile
                pl.BlockSpec((1, tk, C), lambda b, qi, ki: (b, ki, 0)),
                pl.BlockSpec((C, C8), lambda b, qi, ki: (0, 0)),         # WqT
                pl.BlockSpec((1, C8), lambda b, qi, ki: (0, 0)),         # bq
                pl.BlockSpec((C, C + C8), lambda b, qi, ki: (0, 0)),     # W_vk
                pl.BlockSpec((1, C + C8), lambda b, qi, ki: (0, 0)),     # b_vk
                pl.BlockSpec(memory_space=pltpu.MemorySpace.SMEM),       # gamma
            ],
            out_specs=pl.BlockSpec((1, tq, C), lambda b, qi, ki: (b, qi, 0)),
            scratch_shapes=[
                pltpu.VMEM((tq, C8), jnp.bfloat16),   # cached q tile
                pltpu.VMEM((tq, 1), jnp.float32),     # running max m
                pltpu.VMEM((tq, 1), jnp.float32),     # running denom l
                pltpu.VMEM((tq, C), jnp.float32),     # output accumulator
            ],
        ),
        compiler_params=pltpu.CompilerParams(
            dimension_semantics=("parallel", "parallel", "arbitrary"),
            vmem_limit_bytes=48 * 1024 * 1024,
        ),
    )(x_bnc, x_bnc, wq_t, bq_r, wvk, bvk, gamma_s)

    # (B, N, C) -> (B, C, N) -> (B, C, H, W)
    return jnp.transpose(out_bnc, (0, 2, 1)).reshape(B, C, H, W)


def pam_module_reference(x_nchw, wq, bq, wk, bk, wv, bv, gamma):
    """Pure-JAX f32 reference mirroring the PyTorch forward."""
    B, C, H, W = x_nchw.shape
    N = H * W
    x = x_nchw.reshape(B, C, N)
    q = jnp.einsum('oc,bcn->bon', wq, x) + bq[None, :, None]       # (B, C8, N)
    k = jnp.einsum('oc,bcn->bon', wk, x) + bk[None, :, None]
    v = jnp.einsum('oc,bcn->bon', wv, x) + bv[None, :, None]       # (B, C, N)
    energy = jnp.einsum('bci,bcj->bij', q, k)                      # (B, N, N)
    attention = jax.nn.softmax(energy, axis=-1)
    out = jnp.einsum('bcj,bij->bci', v, attention)                 # (B, C, N)
    out = gamma[0] * out + x
    return out.reshape(B, C, H, W)


if __name__ == "__main__":
    # Small shapes consistent with the module: in_dim divisible by 8.
    B, C, H, W = 2, 16, 16, 16
    C8 = C // 8
    N = H * W

    key = jax.random.PRNGKey(0)
    kx, kwq, kbq, kwk, kbk, kwv, kbv = jax.random.split(key, 7)

    x = jax.random.normal(kx, (B, C, H, W), dtype=jnp.float32)

    scale = 0.1
    wq = scale * jax.random.normal(kwq, (C8, C), dtype=jnp.float32)
    bq = scale * jax.random.normal(kbq, (C8,), dtype=jnp.float32)
    wk = scale * jax.random.normal(kwk, (C8, C), dtype=jnp.float32)
    bk = scale * jax.random.normal(kbk, (C8,), dtype=jnp.float32)
    wv = scale * jax.random.normal(kwv, (C, C), dtype=jnp.float32)
    bv = scale * jax.random.normal(kbv, (C,), dtype=jnp.float32)
    # PyTorch inits gamma to 0 (out == x); use a nonzero value so the
    # attention path is actually exercised.
    gamma = jnp.array([0.5], dtype=jnp.float32)

    # Small tiles so the online-softmax KV loop runs multiple steps (grid 2x2x4).
    y = pam_module_forward(x, wq, bq, wk, bk, wv, bv, gamma, tq=128, tk=64)
    y = jax.block_until_ready(y)

    y_ref = pam_module_reference(x, wq, bq, wk, bk, wv, bv, gamma)
    # MXU operands are bf16 (f32 accumulation / softmax), so compare at 1e-2.
    assert jnp.allclose(y, y_ref, atol=1e-2, rtol=1e-2), "mismatch vs reference"

    print("KERNEL_OK")
</pallas_src>

<mosaic_0001>
module attributes {stable_mosaic.version = 11 : i64} {
  func.func @_pam_flash_kernel(%arg0: i32, %arg1: i32, %arg2: i32, %arg3: memref<1x128x16xf32, #tpu.memory_space<vmem>>, %arg4: memref<1x64x16xf32, #tpu.memory_space<vmem>>, %arg5: memref<16x2xbf16, #tpu.memory_space<vmem>>, %arg6: memref<1x2xf32, #tpu.memory_space<vmem>>, %arg7: memref<16x18xbf16, #tpu.memory_space<vmem>>, %arg8: memref<1x18xf32, #tpu.memory_space<vmem>>, %arg9: memref<1xf32, #tpu.memory_space<smem>>, %arg10: memref<1x128x16xf32, #tpu.memory_space<vmem>>, %arg11: memref<128x2xbf16, #tpu.memory_space<vmem>>, %arg12: memref<128x1xf32, #tpu.memory_space<vmem>>, %arg13: memref<128x1xf32, #tpu.memory_space<vmem>>, %arg14: memref<128x16xf32, #tpu.memory_space<vmem>>) attributes {dimension_semantics = [#tpu.dimension_semantics<parallel>, #tpu.dimension_semantics<parallel>, #tpu.dimension_semantics<arbitrary>], iteration_bounds = array<i64: 2, 2, 4>, scalar_prefetch = 0 : i64, scratch_operands = 4 : i64, tpu.core_type = #tpu.core_type<tc>, window_params = [{transform_indices = @transform_0, window_bounds = array<i64: 1, 128, 16>}, {transform_indices = @transform_1, window_bounds = array<i64: 1, 64, 16>}, {pipeline_mode = #tpu.pipeline_mode<synchronous>, transform_indices = @transform_2, window_bounds = array<i64: 16, 2>}, {pipeline_mode = #tpu.pipeline_mode<synchronous>, transform_indices = @transform_3, window_bounds = array<i64: 1, 2>}, {pipeline_mode = #tpu.pipeline_mode<synchronous>, transform_indices = @transform_4, window_bounds = array<i64: 16, 18>}, {pipeline_mode = #tpu.pipeline_mode<synchronous>, transform_indices = @transform_5, window_bounds = array<i64: 1, 18>}, {transform_indices = @transform_6, window_bounds = array<i64: 1>}, {transform_indices = @transform_7, window_bounds = array<i64: 1, 128, 16>}]} {
    %c0_i32 = arith.constant 0 : i32
    %0 = arith.cmpi eq, %arg2, %c0_i32 : i32
    %1 = arith.extui %0 : i1 to i32
    %c0_i32_0 = arith.constant 0 : i32
    %2 = arith.cmpi ne, %1, %c0_i32_0 : i32
    scf.if %2 {
      %c0_26 = arith.constant 0 : index
      %c0_27 = arith.constant 0 : index
      %c0_28 = arith.constant 0 : index
      %43 = vector.load %arg3[%c0_26, %c0_27, %c0_28] : memref<1x128x16xf32, #tpu.memory_space<vmem>>, vector<1x128x16xf32>
      %44 = vector.shape_cast %43 : vector<1x128x16xf32> to vector<128x16xf32>
      %45 = arith.truncf %44 : vector<128x16xf32> to vector<128x16xbf16>
      %c0_29 = arith.constant 0 : index
      %c0_30 = arith.constant 0 : index
      %46 = vector.load %arg5[%c0_29, %c0_30] : memref<16x2xbf16, #tpu.memory_space<vmem>>, vector<16x2xbf16>
      %cst_31 = arith.constant dense<0.000000e+00> : vector<128x2xf32>
      %47 = tpu.matmul %45, %46, %cst_31 {dimension_numbers = #tpu.dot_dimension_numbers<[1], [0], [0], [1], [0, 0, 1, 1], [], []>} : vector<128x16xbf16>, vector<16x2xbf16>, vector<128x2xf32> -> vector<128x2xf32>
      %c0_32 = arith.constant 0 : index
      %c0_33 = arith.constant 0 : index
      %48 = vector.load %arg6[%c0_32, %c0_33] : memref<1x2xf32, #tpu.memory_space<vmem>>, vector<1x2xf32>
      %49 = vector.broadcast %48 : vector<1x2xf32> to vector<128x2xf32>
      %50 = arith.addf %47, %49 : vector<128x2xf32>
      %51 = arith.truncf %50 : vector<128x2xf32> to vector<128x2xbf16>
      %c0_34 = arith.constant 0 : index
      %c0_35 = arith.constant 0 : index
      %52 = vector.load %arg11[%c0_34, %c0_35] : memref<128x2xbf16, #tpu.memory_space<vmem>>, vector<128x2xbf16>
      tpu.vector_store %arg11[%c0_34, %c0_35], %51 {strides = array<i32>} : memref<128x2xbf16, #tpu.memory_space<vmem>>, vector<128x2xbf16>,
      %cst_36 = arith.constant 0xFF800000 : f32
      %53 = vector.broadcast %cst_36 : f32 to vector<128x1xf32>
      %c0_37 = arith.constant 0 : index
      %c0_38 = arith.constant 0 : index
      %54 = vector.load %arg12[%c0_37, %c0_38] : memref<128x1xf32, #tpu.memory_space<vmem>>, vector<128x1xf32>
      tpu.vector_store %arg12[%c0_37, %c0_38], %53 {strides = array<i32>} : memref<128x1xf32, #tpu.memory_space<vmem>>, vector<128x1xf32>,
      %cst_39 = arith.constant 0.000000e+00 : f32
      %55 = vector.broadcast %cst_39 : f32 to vector<128x1xf32>
      %c0_40 = arith.constant 0 : index
      %c0_41 = arith.constant 0 : index
      %56 = vector.load %arg13[%c0_40, %c0_41] : memref<128x1xf32, #tpu.memory_space<vmem>>, vector<128x1xf32>
      tpu.vector_store %arg13[%c0_40, %c0_41], %55 {strides = array<i32>} : memref<128x1xf32, #tpu.memory_space<vmem>>, vector<128x1xf32>,
      %cst_42 = arith.constant 0.000000e+00 : f32
      %57 = vector.broadcast %cst_42 : f32 to vector<128x16xf32>
      %c0_43 = arith.constant 0 : index
      %c0_44 = arith.constant 0 : index
      %58 = vector.load %arg14[%c0_43, %c0_44] : memref<128x16xf32, #tpu.memory_space<vmem>>, vector<128x16xf32>
      tpu.vector_store %arg14[%c0_43, %c0_44], %57 {strides = array<i32>} : memref<128x16xf32, #tpu.memory_space<vmem>>, vector<128x16xf32>,
    } else {
    }
    %c0 = arith.constant 0 : index
    %c0_1 = arith.constant 0 : index
    %c0_2 = arith.constant 0 : index
    %3 = vector.load %arg4[%c0, %c0_1, %c0_2] : memref<1x64x16xf32, #tpu.memory_space<vmem>>, vector<1x64x16xf32>
    %4 = vector.shape_cast %3 : vector<1x64x16xf32> to vector<64x16xf32>
    %5 = arith.truncf %4 : vector<64x16xf32> to vector<64x16xbf16>
    %c0_3 = arith.constant 0 : index
    %c0_4 = arith.constant 0 : index
    %6 = vector.load %arg7[%c0_3, %c0_4] : memref<16x18xbf16, #tpu.memory_space<vmem>>, vector<16x18xbf16>
    %cst = arith.constant dense<0.000000e+00> : vector<64x18xf32>
    %7 = tpu.matmul %5, %6, %cst {dimension_numbers = #tpu.dot_dimension_numbers<[1], [0], [0], [1], [0, 0, 1, 1], [], []>} : vector<64x16xbf16>, vector<16x18xbf16>, vector<64x18xf32> -> vector<64x18xf32>
    %c0_5 = arith.constant 0 : index
    %c0_6 = arith.constant 0 : index
    %8 = vector.load %arg8[%c0_5, %c0_6] : memref<1x18xf32, #tpu.memory_space<vmem>>, vector<1x18xf32>
    %9 = vector.broadcast %8 : vector<1x18xf32> to vector<64x18xf32>
    %10 = arith.addf %7, %9 : vector<64x18xf32>
    %11 = vector.extract_strided_slice %10 {offsets = [0, 0], sizes = [64, 16], strides = [1, 1]} : vector<64x18xf32> to vector<64x16xf32>
    %12 = arith.truncf %11 : vector<64x16xf32> to vector<64x16xbf16>
    %13 = vector.extract_strided_slice %10 {offsets = [0, 16], sizes = [64, 2], strides = [1, 1]} : vector<64x18xf32> to vector<64x2xf32>
    %14 = arith.truncf %13 : vector<64x2xf32> to vector<64x2xbf16>
    %c0_7 = arith.constant 0 : index
    %c0_8 = arith.constant 0 : index
    %15 = vector.load %arg11[%c0_7, %c0_8] : memref<128x2xbf16, #tpu.memory_space<vmem>>, vector<128x2xbf16>
    %cst_9 = arith.constant dense<0.000000e+00> : vector<128x64xf32>
    %16 = tpu.matmul %15, %14, %cst_9 {dimension_numbers = #tpu.dot_dimension_numbers<[1], [1], [0], [0], [0, 0, 1, 0], [], []>} : vector<128x2xbf16>, vector<64x2xbf16>, vector<128x64xf32> -> vector<128x64xf32>
    %c0_10 = arith.constant 0 : index
    %c0_11 = arith.constant 0 : index
    %17 = vector.load %arg12[%c0_10, %c0_11] : memref<128x1xf32, #tpu.memory_space<vmem>>, vector<128x1xf32>
    %cst_12 = arith.constant dense<0xFF800000> : vector<128xf32>
    %18 = vector.multi_reduction <maximumf>, %16, %cst_12 [1] : vector<128x64xf32> to vector<128xf32>
    %19 = vector.shape_cast %18 : vector<128xf32> to vector<128x1xf32>
    %20 = arith.maximumf %17, %19 : vector<128x1xf32>
    %21 = arith.subf %17, %20 : vector<128x1xf32>
    %22 = math.exp %21 : vector<128x1xf32>
    %23 = vector.broadcast %20 : vector<128x1xf32> to vector<128x64xf32>
    %24 = arith.subf %16, %23 : vector<128x64xf32>
    %25 = math.exp %24 : vector<128x64xf32>
    %c0_13 = arith.constant 0 : index
    %c0_14 = arith.constant 0 : index
    %26 = vector.load %arg13[%c0_13, %c0_14] : memref<128x1xf32, #tpu.memory_space<vmem>>, vector<128x1xf32>
    %27 = arith.mulf %22, %26 : vector<128x1xf32>
    %cst_15 = arith.constant dense<0.000000e+00> : vector<128xf32>
    %28 = vector.multi_reduction <add>, %25, %cst_15 [1] : vector<128x64xf32> to vector<128xf32>
    %29 = vector.shape_cast %28 : vector<128xf32> to vector<128x1xf32>
    %30 = arith.addf %27, %29 : vector<128x1xf32>
    %c0_16 = arith.constant 0 : index
    %c0_17 = arith.constant 0 : index
    %31 = vector.load %arg13[%c0_16, %c0_17] : memref<128x1xf32, #tpu.memory_space<vmem>>, vector<128x1xf32>
    tpu.vector_store %arg13[%c0_16, %c0_17], %30 {strides = array<i32>} : memref<128x1xf32, #tpu.memory_space<vmem>>, vector<128x1xf32>,
    %c0_18 = arith.constant 0 : index
    %c0_19 = arith.constant 0 : index
    %32 = vector.load %arg14[%c0_18, %c0_19] : memref<128x16xf32, #tpu.memory_space<vmem>>, vector<128x16xf32>
    %33 = vector.broadcast %22 : vector<128x1xf32> to vector<128x16xf32>
    %34 = arith.mulf %33, %32 : vector<128x16xf32>
    %35 = arith.truncf %25 : vector<128x64xf32> to vector<128x64xbf16>
    %cst_20 = arith.constant dense<0.000000e+00> : vector<128x16xf32>
    %36 = tpu.matmul %35, %12, %cst_20 {dimension_numbers = #tpu.dot_dimension_numbers<[1], [0], [0], [1], [0, 0, 1, 1], [], []>} : vector<128x64xbf16>, vector<64x16xbf16>, vector<128x16xf32> -> vector<128x16xf32>
    %37 = arith.addf %34, %36 : vector<128x16xf32>
    %c0_21 = arith.constant 0 : index
    %c0_22 = arith.constant 0 : index
    %38 = vector.load %arg14[%c0_21, %c0_22] : memref<128x16xf32, #tpu.memory_space<vmem>>, vector<128x16xf32>
    tpu.vector_store %arg14[%c0_21, %c0_22], %37 {strides = array<i32>} : memref<128x16xf32, #tpu.memory_space<vmem>>, vector<128x16xf32>,
    %c0_23 = arith.constant 0 : index
    %c0_24 = arith.constant 0 : index
    %39 = vector.load %arg12[%c0_23, %c0_24] : memref<128x1xf32, #tpu.memory_space<vmem>>, vector<128x1xf32>
    tpu.vector_store %arg12[%c0_23, %c0_24], %20 {strides = array<i32>} : memref<128x1xf32, #tpu.memory_space<vmem>>, vector<128x1xf32>,
    %c3_i32 = arith.constant 3 : i32
    %40 = arith.cmpi eq, %arg2, %c3_i32 : i32
    %41 = arith.extui %40 : i1 to i32
    %c0_i32_25 = arith.constant 0 : i32
    %42 = arith.cmpi ne, %41, %c0_i32_25 : i32
    scf.if %42 {
      %c0_26 = arith.constant 0 : index
      %c0_27 = arith.constant 0 : index
      %43 = vector.load %arg13[%c0_26, %c0_27] : memref<128x1xf32, #tpu.memory_space<vmem>>, vector<128x1xf32>
      %44 = tpu.reciprocal %43 {approx = true} : vector<128x1xf32> -> vector<128x1xf32>
      %c0_28 = arith.constant 0 : index
      %c0_29 = arith.constant 0 : index
      %45 = vector.load %arg14[%c0_28, %c0_29] : memref<128x16xf32, #tpu.memory_space<vmem>>, vector<128x16xf32>
      %46 = vector.broadcast %44 : vector<128x1xf32> to vector<128x16xf32>
      %47 = arith.mulf %45, %46 : vector<128x16xf32>
      %c0_30 = arith.constant 0 : index
      %48 = memref.load %arg9[%c0_30] : memref<1xf32, #tpu.memory_space<smem>>
      %49 = vector.broadcast %48 : f32 to vector<128x16xf32>
      %50 = arith.mulf %49, %47 : vector<128x16xf32>
      %c0_31 = arith.constant 0 : index
      %c0_32 = arith.constant 0 : index
      %c0_33 = arith.constant 0 : index
      %51 = vector.load %arg3[%c0_31, %c0_32, %c0_33] : memref<1x128x16xf32, #tpu.memory_space<vmem>>, vector<1x128x16xf32>
      %52 = vector.shape_cast %51 : vector<1x128x16xf32> to vector<128x16xf32>
      %53 = arith.addf %50, %52 : vector<128x16xf32>
      %c0_34 = arith.constant 0 : index
      %c0_35 = arith.constant 0 : index
      %c0_36 = arith.constant 0 : index
      %54 = vector.load %arg10[%c0_34, %c0_35, %c0_36] : memref<1x128x16xf32, #tpu.memory_space<vmem>>, vector<1x128x16xf32>
      %55 = vector.shape_cast %54 : vector<1x128x16xf32> to vector<128x16xf32>
      %56 = vector.shape_cast %53 : vector<128x16xf32> to vector<1x128x16xf32>
      tpu.vector_store %arg10[%c0_34, %c0_35, %c0_36], %56 {strides = array<i32>} : memref<1x128x16xf32, #tpu.memory_space<vmem>>, vector<1x128x16xf32>,
    } else {
    }
    return
  }
  func.func @transform_0(%arg0: i32, %arg1: i32, %arg2: i32) -> (i32, i32, i32) {
    %c0_i32 = arith.constant 0 : i32
    %c0_i32_0 = arith.constant 0 : i32
    return %arg0, %arg1, %c0_i32 : i32, i32, i32
  }
  func.func @transform_1(%arg0: i32, %arg1: i32, %arg2: i32) -> (i32, i32, i32) {
    %c0_i32 = arith.constant 0 : i32
    %c0_i32_0 = arith.constant 0 : i32
    return %arg0, %arg2, %c0_i32 : i32, i32, i32
  }
  func.func @transform_2(%arg0: i32, %arg1: i32, %arg2: i32) -> (i32, i32) {
    %c0_i32 = arith.constant 0 : i32
    %c0_i32_0 = arith.constant 0 : i32
    %c0_i32_1 = arith.constant 0 : i32
    return %c0_i32, %c0_i32_0 : i32, i32
  }
  func.func @transform_3(%arg0: i32, %arg1: i32, %arg2: i32) -> (i32, i32) {
    %c0_i32 = arith.constant 0 : i32
    %c0_i32_0 = arith.constant 0 : i32
    %c0_i32_1 = arith.constant 0 : i32
    return %c0_i32, %c0_i32_0 : i32, i32
  }
  func.func @transform_4(%arg0: i32, %arg1: i32, %arg2: i32) -> (i32, i32) {
    %c0_i32 = arith.constant 0 : i32
    %c0_i32_0 = arith.constant 0 : i32
    %c0_i32_1 = arith.constant 0 : i32
    return %c0_i32, %c0_i32_0 : i32, i32
  }
  func.func @transform_5(%arg0: i32, %arg1: i32, %arg2: i32) -> (i32, i32) {
    %c0_i32 = arith.constant 0 : i32
    %c0_i32_0 = arith.constant 0 : i32
    %c0_i32_1 = arith.constant 0 : i32
    return %c0_i32, %c0_i32_0 : i32, i32
  }
  func.func @transform_6(%arg0: i32, %arg1: i32, %arg2: i32) -> i32 {
    %c0_i32 = arith.constant 0 : i32
    %c0_i32_0 = arith.constant 0 : i32
    return %c0_i32 : i32
  }
  func.func @transform_7(%arg0: i32, %arg1: i32, %arg2: i32) -> (i32, i32, i32) {
    %c0_i32 = arith.constant 0 : i32
    %c0_i32_0 = arith.constant 0 : i32
    return %arg0, %arg1, %c0_i32 : i32, i32, i32
  }
}

</mosaic_0001>

<llo_original>
// kernel: tpu_custom_call.1
$region0: #{tpu_custom_call.1}
  #allocation0 [shape = 'u32[]', space=smem, size = 0x4, offset = 0x4, fixed_abs, tag = 'smem constant byte address 0x4 - core index']
  #allocation1 [shape = 'u32[144,128]{1,0:T(1,128)}', space=vmem, size = 0x12000, scoped, tag = 'internal scratch']
  #allocation2 [shape = 'bf16[128,2]{1,0:T(16,128)(2,1)}', space=vmem, size = 0x8000, scoped, tag = 'scratch operand']
  #allocation3 [shape = 'f32[128,1]{1,0:T(8,128)}', space=vmem, size = 0x10000, scoped, tag = 'scratch operand']
  #allocation4 [shape = 'f32[128,1]{1,0:T(8,128)}', space=vmem, size = 0x10000, scoped, tag = 'scratch operand']
  #allocation5 [shape = 'f32[128,16]{1,0:T(8,128)}', space=vmem, size = 0x10000, scoped, tag = 'scratch operand']
  #allocation6 [shape = 'f32[1]{0:T(128)S(6)}', space=smem, size = 0x200, scoped, tag = 'scoped memory for tpu_custom_call.1']
  %s0 = inlined_call_operand.vmem [shape: f32[2,256,16], index: 0, kind: input, shape index: {}]
  %s1 = inlined_call_operand.vmem [shape: f32[2,256,16], index: 1, kind: input, shape index: {}]
  %s2 = inlined_call_operand.vmem [shape: bf16[16,2], index: 2, kind: input, shape index: {}]
  %s3 = inlined_call_operand.vmem [shape: f32[1,2], index: 3, kind: input, shape index: {}]
  %s4 = inlined_call_operand.vmem [shape: bf16[16,18], index: 4, kind: input, shape index: {}]
  %s5 = inlined_call_operand.vmem [shape: f32[1,18], index: 5, kind: input, shape index: {}]
  %s6 = inlined_call_operand.<no memory space> [shape: f32[1], index: 6, kind: input, shape index: {}]
  %s7 = inlined_call_operand.vmem [shape: f32[2,256,16], index: 7, kind: output, shape index: {}]
  %s8 = sld [smem:[#allocation0]]
  $region69: #{tpu_custom_call.1} parent=0
    _
  %s10 = ssub.s32 1, %s8
  %s11 = scalar_select 0, %s10, %s8
  %12 = sst [smem:[#allocation6]] %s6
  loop: start=0, step=1, limit=18
  $region2: #{tpu_custom_call.1} parent=0 // loop_pre_header
    _
  $region3: #{tpu_custom_call.1} parent=0 // loop_header
    %s14 = sphi 0, %s18
    %p15 = scmp.ge.s32.totalorder %s14, 18
    %s21 = sphi 0, %s40
    %s22 = sphi 0, %s36
    %s23 = sphi 0, %s32
    %s24 = sphi 0, %s21
    %s25 = sphi 0, %s22
    %s26 = sphi 0, %s23
    %s27 = sphi 0, %s24
    %s28 = sphi 0, %s25
    %s29 = sphi 0, %s26
    %s45 = sphi 0, %s47
    %s48 = sphi 0, %s45
    %s49 = sphi 0, %s48
    %s65 = sphi 0, %s49
    %s73 = sphi 0, %s75
    %s76 = sphi 0, %s73
    %s77 = sphi 0, %s76
    %s93 = sphi 0, %s77
    %s97 = sphi 0, %s97
    %s99 = sphi 0, %s97
    %s100 = sphi 0, %s99
    %s114 = sphi 0, %s100
    %s118 = sphi 0, %s118
    %s120 = sphi 0, %s118
    %s121 = sphi 0, %s120
    %s135 = sphi 0, %s121
    %s139 = sphi 0, %s139
    %s141 = sphi 0, %s139
    %s142 = sphi 0, %s141
    %s156 = sphi 0, %s142
    %s160 = sphi 0, %s160
    %s162 = sphi 0, %s160
    %s163 = sphi 0, %s162
    %s177 = sphi 0, %s163
    %s181 = sphi 0, %s181
    %s183 = sphi 0, %s181
    %s184 = sphi 0, %s183
    %s198 = sphi 0, %s184
    %s206 = sphi 0, %s208
    %s209 = sphi 0, %s206
    %s210 = sphi 0, %s209
    %s226 = sphi 0, %s210
  $region4: #{tpu_custom_call.1} parent=0 // loop_header_branch
    %17 = sbr.rel (%p15) target = $region8
  $region5: #{tpu_custom_call.1} parent=0 // loop_body
    %s19 = ssub.s32 %s14, 1
    %s20 = ssub.s32 %s14, 2
    %s30 = sadd.s32 1, %s23
    %p31 = scmp.ge.s32.totalorder %s30, 4
    %s32 = scalar_select %p31, 0, %s30
    %s33 = sadd.s32 1, %s22
    %s34 = scalar_select %p31, %s33, %s22
    %p35 = scmp.ge.s32.totalorder %s34, 2
    %s36 = scalar_select %p35, 0, %s34
    %s37 = sadd.s32 1, %s21
    %s38 = scalar_select %p35, %s37, %s21
    %p39 = scmp.ge.s32.totalorder %s38, 2
    %s40 = scalar_select %p39, 0, %s38
    %s41 = ssub.s32 %s21, %s40
    %s42 = ssub.s32 %s22, %s36
    %s43 = sor.u32 %s41, %s42
    %p44 = scmp.eq.s32.totalorder %s43, 0
    %s46 = sadd.s32 %s45, 1
    %s47 = scalar_select %p44, %s45, %s46
    %p50 = pneg %p44
    %p51 = scmp.eq.s32.totalorder %s14, 15
    %p52 = por %p50, %p51
    %p53 = scmp.ne.s32.totalorder %s45, %s48
    %p54 = scmp.eq.s32.totalorder %s14, 0
    %p55 = por %p53, %p54
    %p56 = scmp.ne.s32.totalorder %s45, %s48
    %p57 = scmp.eq.s32.totalorder %s19, 15
    %p58 = por %p56, %p57
    %p59 = scmp.ne.s32.totalorder %s48, %s49
    %p60 = scmp.eq.s32.totalorder %s19, 0
    %p61 = por %p59, %p60
    %p62 = scmp.ne.s32.totalorder %s48, %s49
    %p63 = scmp.eq.s32.totalorder %s20, 15
    %p64 = por %p62, %p63
    %p66 = scmp.ne.s32.totalorder %s49, %s65
    %p67 = scmp.eq.s32.totalorder %s20, 0
    %p68 = por %p66, %p67
    %s69 = ssub.s32 %s21, %s40
    %s70 = ssub.s32 %s23, %s32
    %s71 = sor.u32 %s69, %s70
    %p72 = scmp.eq.s32.totalorder %s71, 0
    %s74 = sadd.s32 %s73, 1
    %s75 = scalar_select %p72, %s73, %s74
    %p78 = pneg %p72
    %p79 = scmp.eq.s32.totalorder %s14, 15
    %p80 = por %p78, %p79
    %p81 = scmp.ne.s32.totalorder %s73, %s76
    %p82 = scmp.eq.s32.totalorder %s14, 0
    %p83 = por %p81, %p82
    %p84 = scmp.ne.s32.totalorder %s73, %s76
    %p85 = scmp.eq.s32.totalorder %s19, 15
    %p86 = por %p84, %p85
    %p87 = scmp.ne.s32.totalorder %s76, %s77
    %p88 = scmp.eq.s32.totalorder %s19, 0
    %p89 = por %p87, %p88
    %p90 = scmp.ne.s32.totalorder %s76, %s77
    %p91 = scmp.eq.s32.totalorder %s20, 15
    %p92 = por %p90, %p91
    %p94 = scmp.ne.s32.totalorder %s77, %s93
    %p95 = scmp.eq.s32.totalorder %s20, 0
    %p96 = por %p94, %p95
    %s98 = sadd.s32 %s97, 1
    %p101 = scmp.eq.s32.totalorder %s14, 15
    %p102 = scmp.ne.s32.totalorder %s97, %s99
    %p103 = scmp.eq.s32.totalorder %s14, 0
    %p104 = por %p102, %p103
    %p105 = scmp.ne.s32.totalorder %s97, %s99
    %p106 = scmp.eq.s32.totalorder %s19, 15
    %p107 = por %p105, %p106
    %p108 = scmp.ne.s32.totalorder %s99, %s100
    %p109 = scmp.eq.s32.totalorder %s19, 0
    %p110 = por %p108, %p109
    %p111 = scmp.ne.s32.totalorder %s99, %s100
    %p112 = scmp.eq.s32.totalorder %s20, 15
    %p113 = por %p111, %p112
    %p115 = scmp.ne.s32.totalorder %s100, %s114
    %p116 = scmp.eq.s32.totalorder %s20, 0
    %p117 = por %p115, %p116
    %s119 = sadd.s32 %s118, 1
    %p122 = scmp.eq.s32.totalorder %s14, 15
    %p123 = scmp.ne.s32.totalorder %s118, %s120
    %p124 = scmp.eq.s32.totalorder %s14, 0
    %p125 = por %p123, %p124
    %p126 = scmp.ne.s32.totalorder %s118, %s120
    %p127 = scmp.eq.s32.totalorder %s19, 15
    %p128 = por %p126, %p127
    %p129 = scmp.ne.s32.totalorder %s120, %s121
    %p130 = scmp.eq.s32.totalorder %s19, 0
    %p131 = por %p129, %p130
    %p132 = scmp.ne.s32.totalorder %s120, %s121
    %p133 = scmp.eq.s32.totalorder %s20, 15
    %p134 = por %p132, %p133
    %p136 = scmp.ne.s32.totalorder %s121, %s135
    %p137 = scmp.eq.s32.totalorder %s20, 0
    %p138 = por %p136, %p137
    %s140 = sadd.s32 %s139, 1
    %p143 = scmp.eq.s32.totalorder %s14, 15
    %p144 = scmp.ne.s32.totalorder %s139, %s141
    %p145 = scmp.eq.s32.totalorder %s14, 0
    %p146 = por %p144, %p145
    %p147 = scmp.ne.s32.totalorder %s139, %s141
    %p148 = scmp.eq.s32.totalorder %s19, 15
    %p149 = por %p147, %p148
    %p150 = scmp.ne.s32.totalorder %s141, %s142
    %p151 = scmp.eq.s32.totalorder %s19, 0
    %p152 = por %p150, %p151
    %p153 = scmp.ne.s32.totalorder %s141, %s142
    %p154 = scmp.eq.s32.totalorder %s20, 15
    %p155 = por %p153, %p154
    %p157 = scmp.ne.s32.totalorder %s142, %s156
    %p158 = scmp.eq.s32.totalorder %s20, 0
    %p159 = por %p157, %p158
    %s161 = sadd.s32 %s160, 1
    %p164 = scmp.eq.s32.totalorder %s14, 15
    %p165 = scmp.ne.s32.totalorder %s160, %s162
    %p166 = scmp.eq.s32.totalorder %s14, 0
    %p167 = por %p165, %p166
    %p168 = scmp.ne.s32.totalorder %s160, %s162
    %p169 = scmp.eq.s32.totalorder %s19, 15
    %p170 = por %p168, %p169
    %p171 = scmp.ne.s32.totalorder %s162, %s163
    %p172 = scmp.eq.s32.totalorder %s19, 0
    %p173 = por %p171, %p172
    %p174 = scmp.ne.s32.totalorder %s162, %s163
    %p175 = scmp.eq.s32.totalorder %s20, 15
    %p176 = por %p174, %p175
    %p178 = scmp.ne.s32.totalorder %s163, %s177
    %p179 = scmp.eq.s32.totalorder %s20, 0
    %p180 = por %p178, %p179
    %s182 = sadd.s32 %s181, 1
    %p185 = scmp.eq.s32.totalorder %s14, 15
    %p186 = scmp.ne.s32.totalorder %s181, %s183
    %p187 = scmp.eq.s32.totalorder %s14, 0
    %p188 = por %p186, %p187
    %p189 = scmp.ne.s32.totalorder %s181, %s183
    %p190 = scmp.eq.s32.totalorder %s19, 15
    %p191 = por %p189, %p190
    %p192 = scmp.ne.s32.totalorder %s183, %s184
    %p193 = scmp.eq.s32.totalorder %s19, 0
    %p194 = por %p192, %p193
    %p195 = scmp.ne.s32.totalorder %s183, %s184
    %p196 = scmp.eq.s32.totalorder %s20, 15
    %p197 = por %p195, %p196
    %p199 = scmp.ne.s32.totalorder %s184, %s198
    %p200 = scmp.eq.s32.totalorder %s20, 0
    %p201 = por %p199, %p200
    %s202 = ssub.s32 %s21, %s40
    %s203 = ssub.s32 %s22, %s36
    %s204 = sor.u32 %s202, %s203
    %p205 = scmp.eq.s32.totalorder %s204, 0
    %s207 = sadd.s32 %s206, 1
    %s208 = scalar_select %p205, %s206, %s207
    %p211 = pneg %p205
    %p212 = scmp.eq.s32.totalorder %s14, 15
    %p213 = por %p211, %p212
    %p214 = scmp.ne.s32.totalorder %s206, %s209
    %p215 = scmp.eq.s32.totalorder %s14, 0
    %p216 = por %p214, %p215
    %p217 = scmp.ne.s32.totalorder %s206, %s209
    %p218 = scmp.eq.s32.totalorder %s19, 15
    %p219 = por %p217, %p218
    %p220 = scmp.ne.s32.totalorder %s209, %s210
    %p221 = scmp.eq.s32.totalorder %s19, 0
    %p222 = por %p220, %p221
    %p223 = scmp.ne.s32.totalorder %s209, %s210
    %p224 = scmp.eq.s32.totalorder %s20, 15
    %p225 = por %p223, %p224
    %p227 = scmp.ne.s32.totalorder %s210, %s226
    %p228 = scmp.eq.s32.totalorder %s20, 0
    %p229 = por %p227, %p228
    %p230 = scmp.le.s32.totalorder 1, %s14
    %p231 = scmp.lt.s32.totalorder %s14, 17
    %p232 = pnand %p230, %p231
    %p233 = pneg %p232
    // Predicated region
    $region9: #{tpu_custom_call.1} parent=5 // pred_check
      _
    $region10: #{tpu_custom_call.1} parent=5 // pred_check_branch
      %235 = sbr.rel (%p232) target = $region12
    $region11: #{tpu_custom_call.1} parent=5 // pred_region
      %s236 = ssub.s32 %s14, 1
      // Predicated region
      $region13: #{tpu_custom_call.1} parent=11 // pred_check
        %p237 = pneg %p110
      $region14: #{tpu_custom_call.1} parent=11 // pred_check_branch
        %239 = sbr.rel (%p237) target = $region16
      $region15: #{tpu_custom_call.1} parent=11 // pred_region
        _
      $region16: #{tpu_custom_call.1} parent=11 // pred_fallthru
        _
      // Predicated region
      $region17: #{tpu_custom_call.1} parent=11 // pred_check
        %p240 = pneg %p131
      $region18: #{tpu_custom_call.1} parent=11 // pred_check_branch
        %242 = sbr.rel (%p240) target = $region20
      $region19: #{tpu_custom_call.1} parent=11 // pred_region
        _
      $region20: #{tpu_custom_call.1} parent=11 // pred_fallthru
        _
      // Predicated region
      $region21: #{tpu_custom_call.1} parent=11 // pred_check
        %p243 = pneg %p152
      $region22: #{tpu_custom_call.1} parent=11 // pred_check_branch
        %245 = sbr.rel (%p243) target = $region24
      $region23: #{tpu_custom_call.1} parent=11 // pred_region
        _
      $region24: #{tpu_custom_call.1} parent=11 // pred_fallthru
        _
      // Predicated region
      $region25: #{tpu_custom_call.1} parent=11 // pred_check
        %p246 = pneg %p173
      $region26: #{tpu_custom_call.1} parent=11 // pred_check_branch
        %248 = sbr.rel (%p246) target = $region28
      $region27: #{tpu_custom_call.1} parent=11 // pred_region
        _
      $region28: #{tpu_custom_call.1} parent=11 // pred_fallthru
        _
      // Predicated region
      $region29: #{tpu_custom_call.1} parent=11 // pred_check
        %p249 = pneg %p194
      $region30: #{tpu_custom_call.1} parent=11 // pred_check_branch
        %251 = sbr.rel (%p249) target = $region32
      $region31: #{tpu_custom_call.1} parent=11 // pred_region
        _
      $region32: #{tpu_custom_call.1} parent=11 // pred_fallthru
        _
    $region12: #{tpu_custom_call.1} parent=5 // pred_fallthru
      _
    %p252 = scmp.lt.s32.totalorder %s14, 16
    // Predicated region
    $region33: #{tpu_custom_call.1} parent=5 // pred_check
      %p253 = pneg %p252
    $region34: #{tpu_custom_call.1} parent=5 // pred_check_branch
      %255 = sbr.rel (%p253) target = $region36
    $region35: #{tpu_custom_call.1} parent=5 // pred_region
      // Predicated region
      $region37: #{tpu_custom_call.1} parent=35 // pred_check
        %p256 = pneg %p55
      $region38: #{tpu_custom_call.1} parent=35 // pred_check_branch
        %258 = sbr.rel (%p256) target = $region40
      $region39: #{tpu_custom_call.1} parent=35 // pred_region
        %s259 = smul.u32 16, %s22
        %p260 = scmp.lt.s32.totalorder %s21, 1
        %s261 = scalar_select %p260, %s21, 1
        %p262 = scmp.lt.s32.totalorder %s259, 31
        %s263 = scalar_select %p262, %s259, 31
        %s264 = smul.addr %s261, 32
        %s265 = sadd.s32 %s263, %s264
        %s266 = smul.addr %s265, 8
        %s267 = scalar_lea.vmem %s0, %s266
        %s268 = smul.u32 16, %s22
      $region40: #{tpu_custom_call.1} parent=35 // pred_fallthru
        _
      // Predicated region
      $region41: #{tpu_custom_call.1} parent=35 // pred_check
        %p269 = pneg %p83
      $region42: #{tpu_custom_call.1} parent=35 // pred_check_branch
        %271 = sbr.rel (%p269) target = $region44
      $region43: #{tpu_custom_call.1} parent=35 // pred_region
        %s272 = smul.u32 8, %s23
        %p273 = scmp.lt.s32.totalorder %s21, 1
        %s274 = scalar_select %p273, %s21, 1
        %p275 = scmp.lt.s32.totalorder %s272, 31
        %s276 = scalar_select %p275, %s272, 31
        %s277 = smul.addr %s274, 32
        %s278 = sadd.s32 %s276, %s277
        %s279 = smul.addr %s278, 8
        %s280 = scalar_lea.vmem %s1, %s279
        %s281 = smul.u32 8, %s23
      $region44: #{tpu_custom_call.1} parent=35 // pred_fallthru
        _
    $region36: #{tpu_custom_call.1} parent=5 // pred_fallthru
      _
    %p282 = scmp.le.s32.totalorder 1, %s14
    %p283 = scmp.lt.s32.totalorder %s14, 17
    %p284 = pnand %p282, %p283
    %p285 = pneg %p284
    // Predicated region
    $region45: #{tpu_custom_call.1} parent=5 // pred_check
      _
    $region46: #{tpu_custom_call.1} parent=5 // pred_check_branch
      %287 = sbr.rel (%p284) target = $region48
    $region47: #{tpu_custom_call.1} parent=5 // pred_region
      %s288 = ssub.s32 %s14, 1
      %s289 = smul.u32 16, %s25
      %p290 = scmp.lt.s32.totalorder %s24, 1
      %s291 = scalar_select %p290, %s24, 1
      %p292 = scmp.lt.s32.totalorder %s289, 31
      %s293 = scalar_select %p292, %s289, 31
      %s294 = smul.addr %s291, 32
      %s295 = sadd.s32 %s293, %s294
      %s296 = smul.addr %s295, 8
      %s297 = scalar_lea.vmem %s0, %s296
      %p298 = pneg %p61
      %p299 = pneg %p58
      %s300 = smul.u32 8, %s26
      %p301 = scmp.lt.s32.totalorder %s24, 1
      %s302 = scalar_select %p301, %s24, 1
      %p303 = scmp.lt.s32.totalorder %s300, 31
      %s304 = scalar_select %p303, %s300, 31
      %s305 = smul.addr %s302, 32
      %s306 = sadd.s32 %s304, %s305
      %s307 = smul.addr %s306, 8
      %s308 = scalar_lea.vmem %s1, %s307
      %p309 = pneg %p89
      %p310 = pneg %p86
      %p311 = pneg %p110
      %p312 = pneg %p107
      %p313 = pneg %p131
      %p314 = pneg %p128
      %p315 = pneg %p152
      %p316 = pneg %p149
      %p317 = pneg %p173
      %p318 = pneg %p170
      %p319 = pneg %p194
      %p320 = pneg %p191
      %p321 = pneg %p222
      %p322 = pneg %p219
      %s323 = smul.u32 16, %s25
      %p324 = scmp.lt.s32.totalorder %s24, 1
      %s325 = scalar_select %p324, %s24, 1
      %p326 = scmp.lt.s32.totalorder %s323, 31
      %s327 = scalar_select %p326, %s323, 31
      %s328 = smul.addr %s325, 32
      %s329 = sadd.s32 %s327, %s328
      %s330 = smul.addr %s329, 8
      %s331 = scalar_lea.vmem %s7, %s330
      %s332 = smul.u32 16, %s25
      %p333 = scmp.lt.s32.totalorder %s24, 1
      %s334 = scalar_select %p333, %s24, 1
      %p335 = scmp.lt.s32.totalorder %s332, 31
      %s336 = scalar_select %p335, %s332, 31
      %s337 = smul.addr %s334, 32
      %s338 = sadd.s32 %s336, %s337
      %s339 = smul.addr %s338, 8
      %s340 = scalar_lea.vmem %s0, %s339
      %s341 = smul.u32 16, %s25
      %s342 = smul.u32 8, %s26
      %p343 = scmp.lt.s32.totalorder %s24, 1
      %s344 = scalar_select %p343, %s24, 1
      %p345 = scmp.lt.s32.totalorder %s342, 31
      %s346 = scalar_select %p345, %s342, 31
      %s347 = smul.addr %s344, 32
      %s348 = sadd.s32 %s346, %s347
      %s349 = smul.addr %s348, 8
      %s350 = scalar_lea.vmem %s1, %s349
      %s351 = smul.u32 8, %s26
      %s352 = smul.u32 16, %s25
      %p353 = scmp.lt.s32.totalorder %s24, 1
      %s354 = scalar_select %p353, %s24, 1
      %p355 = scmp.lt.s32.totalorder %s352, 31
      %s356 = scalar_select %p355, %s352, 31
      %s357 = smul.addr %s354, 32
      %s358 = sadd.s32 %s356, %s357
      %s359 = smul.addr %s358, 8
      %s360 = scalar_lea.vmem %s7, %s359
      %s361 = smul.u32 16, %s25
      %p363 = scmp.eq.s32.totalorder %s26, 0
      // Predicated region
      $region49: #{tpu_custom_call.1} parent=47 // pred_check
        %p364 = pneg %p363
      $region50: #{tpu_custom_call.1} parent=47 // pred_check_branch
        %366 = sbr.rel (%p364) target = $region52
      $region51: #{tpu_custom_call.1} parent=47 // pred_region
        %v367 = vld [vmem:[%s340] sm:$0xff]
        %v368 = vld [vmem:[%s340 + $0x8] sm:$0xff]
        %v369 = vld [vmem:[%s340 + $0x10] sm:$0xff]
        %v370 = vld [vmem:[%s340 + $0x18] sm:$0xff]
        %v371 = vld [vmem:[%s340 + $0x20] sm:$0xff]
        %v372 = vld [vmem:[%s340 + $0x28] sm:$0xff]
        %v373 = vld [vmem:[%s340 + $0x30] sm:$0xff]
        %v374 = vld [vmem:[%s340 + $0x38] sm:$0xff]
        %v375 = vld [vmem:[%s340 + $0x40] sm:$0xff]
        %v376 = vld [vmem:[%s340 + $0x48] sm:$0xff]
        %v377 = vld [vmem:[%s340 + $0x50] sm:$0xff]
        %v378 = vld [vmem:[%s340 + $0x58] sm:$0xff]
        %v379 = vld [vmem:[%s340 + $0x60] sm:$0xff]
        %v380 = vld [vmem:[%s340 + $0x68] sm:$0xff]
        %v381 = vld [vmem:[%s340 + $0x70] sm:$0xff]
        %v382 = vld [vmem:[%s340 + $0x78] sm:$0xff]
        %v383 = vpack.c.bf16 %v368, %v367
        %v384 = vpack.c.bf16 %v370, %v369
        %v385 = vpack.c.bf16 %v372, %v371
        %v386 = vpack.c.bf16 %v374, %v373
        %v387 = vpack.c.bf16 %v376, %v375
        %v388 = vpack.c.bf16 %v378, %v377
        %v389 = vpack.c.bf16 %v380, %v379
        %v390 = vpack.c.bf16 %v382, %v381
        %v391 = vld [vmem:[%s2] sm:$0xf]
        %v392 = vld [vmem:[%s2 + $0x4] sm:$0xf]
        %v393 = vld [vmem:[%s3] sm:$0x1]
        %v395 = vlaneseq
        %v396 = vshrl.u32 %v395, 7
        %v397 = vsub.s32 0, %v396
        %v398 = vrot.slane %v393, %v397
        %v402 = vunpack.c.l.b16 %v391
        %v403 = vunpack.c.l.b16 %v392
        %v404 = vpack.c.b16 %v403, %v402
        %vm406 = vcmask 130048
        %v408 = vsel %vm406, %v383, 0
        %v411 = vsel %vm406, %v384, 0
        %v414 = vsel %vm406, %v385, 0
        %v417 = vsel %vm406, %v386, 0
        %v420 = vsel %vm406, %v387, 0
        %v423 = vsel %vm406, %v388, 0
        %v426 = vsel %vm406, %v389, 0
        %v429 = vsel %vm406, %v390, 0
        %431 = vmatprep.subr.bf16.mxu0 0
        %432 = vmatpush1.bf16.msra.mxu0 %v404
        %433 = vmatprep.subr.bf16.mxu0 0
        %434 = vmatpush1.bf16.msra.mxu0 0
        %435 = vmatprep.subr.bf16.mxu0 0
        %436 = vmatpush1.bf16.msra.mxu0 0
        %437 = vmatprep.subr.bf16.mxu0 0
        %438 = vmatpush1.bf16.msra.mxu0 0
        %439 = vmatprep.subr.bf16.mxu0 0
        %440 = vmatpush1.bf16.msra.mxu0 0
        %441 = vmatprep.subr.bf16.mxu0 0
        %442 = vmatpush1.bf16.msra.mxu0 0
        %443 = vmatprep.subr.bf16.mxu0 0
        %444 = vmatpush1.bf16.msra.mxu0 0
        %445 = vmatprep.subr.bf16.mxu0 0
        %446 = vmatpush1.bf16.msra.mxu0 0
        %447 = vmatprep.subr.bf16.mxu0 0
        %448 = vmatpush1.bf16.msra.mxu0 0
        %449 = vmatprep.subr.bf16.mxu0 0
        %450 = vmatpush1.bf16.msra.mxu0 0
        %451 = vmatprep.subr.bf16.mxu0 0
        %452 = vmatpush1.bf16.msra.mxu0 0
        %453 = vmatprep.subr.bf16.mxu0 0
        %454 = vmatpush1.bf16.msra.mxu0 0
        %455 = vmatprep.subr.bf16.mxu0 0
        %456 = vmatpush1.bf16.msra.mxu0 0
        %457 = vmatprep.subr.bf16.mxu0 0
        %458 = vmatpush1.bf16.msra.mxu0 0
        %459 = vmatprep.subr.bf16.mxu0 0
        %460 = vmatpush1.bf16.msra.mxu0 0
        %461 = vmatprep.subr.bf16.mxu0 0
        %462 = vmatpush1.bf16.msra.mxu0 0
        %463 = vmatprep.mubr.bf16.mxu0 0
        %464 = vmatmul.mubr.bf16.gmra.mrb[0].mxu0 %v408
        %v465 = vpop.f32.mrb[0].mxu0
        %v466 = vadd.f32 %v398, %v465
        %v467 = vpop.f32.mrb[0].mxu0
        %v468 = vpop.f32.mrb[0].mxu0
        %v469 = vadd.f32 %v398, %v468
        %v470 = vpop.f32.mrb[0].mxu0
        %471 = vmatprep.mubr.bf16.mxu0 0
        %472 = vmatmul.mubr.bf16.gmra.mrb[0].mxu0 %v411
        %v473 = vpop.f32.mrb[0].mxu0
        %v474 = vadd.f32 %v398, %v473
        %v475 = vpop.f32.mrb[0].mxu0
        %v476 = vpop.f32.mrb[0].mxu0
        %v477 = vadd.f32 %v398, %v476
        %v478 = vpop.f32.mrb[0].mxu0
        %479 = vmatprep.mubr.bf16.mxu0 0
        %480 = vmatmul.mubr.bf16.gmra.mrb[0].mxu0 %v414
        %v481 = vpop.f32.mrb[0].mxu0
        %v482 = vadd.f32 %v398, %v481
        %v483 = vpop.f32.mrb[0].mxu0
        %v484 = vpop.f32.mrb[0].mxu0
        %v485 = vadd.f32 %v398, %v484
        %v486 = vpop.f32.mrb[0].mxu0
        %487 = vmatprep.mubr.bf16.mxu0 0
        %488 = vmatmul.mubr.bf16.gmra.mrb[0].mxu0 %v417
        %v489 = vpop.f32.mrb[0].mxu0
        %v490 = vadd.f32 %v398, %v489
        %v491 = vpop.f32.mrb[0].mxu0
        %v492 = vpop.f32.mrb[0].mxu0
        %v493 = vadd.f32 %v398, %v492
        %v494 = vpop.f32.mrb[0].mxu0
        %495 = vmatprep.mubr.bf16.mxu0 0
        %496 = vmatmul.mubr.bf16.gmra.mrb[0].mxu0 %v420
        %v497 = vpop.f32.mrb[0].mxu0
        %v498 = vadd.f32 %v398, %v497
        %v499 = vpop.f32.mrb[0].mxu0
        %v500 = vpop.f32.mrb[0].mxu0
        %v501 = vadd.f32 %v398, %v500
        %v502 = vpop.f32.mrb[0].mxu0
        %503 = vmatprep.mubr.bf16.mxu0 0
        %504 = vmatmul.mubr.bf16.gmra.mrb[0].mxu0 %v423
        %v505 = vpop.f32.mrb[0].mxu0
        %v506 = vadd.f32 %v398, %v505
        %v507 = vpop.f32.mrb[0].mxu0
        %v508 = vpop.f32.mrb[0].mxu0
        %v509 = vadd.f32 %v398, %v508
        %v510 = vpop.f32.mrb[0].mxu0
        %511 = vmatprep.mubr.bf16.mxu0 0
        %512 = vmatmul.mubr.bf16.gmra.mrb[0].mxu0 %v426
        %v513 = vpop.f32.mrb[0].mxu0
        %v514 = vadd.f32 %v398, %v513
        %v515 = vpop.f32.mrb[0].mxu0
        %v516 = vpop.f32.mrb[0].mxu0
        %v517 = vadd.f32 %v398, %v516
        %v518 = vpop.f32.mrb[0].mxu0
        %519 = vmatprep.mubr.bf16.mxu0 0
        %520 = vmatmul.mubr.bf16.gmra.mrb[0].mxu0 %v429
        %v521 = vpop.f32.mrb[0].mxu0
        %v522 = vadd.f32 %v398, %v521
        %v523 = vpop.f32.mrb[0].mxu0
        %v524 = vpop.f32.mrb[0].mxu0
        %v525 = vadd.f32 %v398, %v524
        %v526 = vpop.f32.mrb[0].mxu0
        %527 = vdwg.mxu0
        %v528 = vpack.c.bf16 %v469, %v466
        %v529 = vpack.c.bf16 %v477, %v474
        %v530 = vpack.c.bf16 %v485, %v482
        %v531 = vpack.c.bf16 %v493, %v490
        %v532 = vpack.c.bf16 %v501, %v498
        %v533 = vpack.c.bf16 %v509, %v506
        %v534 = vpack.c.bf16 %v517, %v514
        %v535 = vpack.c.bf16 %v525, %v522
        %vm536 = vcmask 15360
        %537 = vst.msk [vmem:[#allocation2] sm:$0xff] %vm536, %v528
        %538 = vst.msk [vmem:[#allocation2 + $0x8] sm:$0xff] %vm536, %v529
        %539 = vst.msk [vmem:[#allocation2 + $0x10] sm:$0xff] %vm536, %v530
        %540 = vst.msk [vmem:[#allocation2 + $0x18] sm:$0xff] %vm536, %v531
        %541 = vst.msk [vmem:[#allocation2 + $0x20] sm:$0xff] %vm536, %v532
        %542 = vst.msk [vmem:[#allocation2 + $0x28] sm:$0xff] %vm536, %v533
        %543 = vst.msk [vmem:[#allocation2 + $0x30] sm:$0xff] %vm536, %v534
        %544 = vst.msk [vmem:[#allocation2 + $0x38] sm:$0xff] %vm536, %v535
        %vm545 = vcmask 7168
        %546 = vst.msk [vmem:[#allocation3] sm:$0xff] %vm545, -inf
        %547 = vst.msk [vmem:[#allocation3 + $0x8] sm:$0xff] %vm545, -inf
        %548 = vst.msk [vmem:[#allocation3 + $0x10] sm:$0xff] %vm545, -inf
        %549 = vst.msk [vmem:[#allocation3 + $0x18] sm:$0xff] %vm545, -inf
        %550 = vst.msk [vmem:[#allocation3 + $0x20] sm:$0xff] %vm545, -inf
        %551 = vst.msk [vmem:[#allocation3 + $0x28] sm:$0xff] %vm545, -inf
        %552 = vst.msk [vmem:[#allocation3 + $0x30] sm:$0xff] %vm545, -inf
        %553 = vst.msk [vmem:[#allocation3 + $0x38] sm:$0xff] %vm545, -inf
        %554 = vst.msk [vmem:[#allocation3 + $0x40] sm:$0xff] %vm545, -inf
        %555 = vst.msk [vmem:[#allocation3 + $0x48] sm:$0xff] %vm545, -inf
        %556 = vst.msk [vmem:[#allocation3 + $0x50] sm:$0xff] %vm545, -inf
        %557 = vst.msk [vmem:[#allocation3 + $0x58] sm:$0xff] %vm545, -inf
        %558 = vst.msk [vmem:[#allocation3 + $0x60] sm:$0xff] %vm545, -inf
        %559 = vst.msk [vmem:[#allocation3 + $0x68] sm:$0xff] %vm545, -inf
        %560 = vst.msk [vmem:[#allocation3 + $0x70] sm:$0xff] %vm545, -inf
        %561 = vst.msk [vmem:[#allocation3 + $0x78] sm:$0xff] %vm545, -inf
        %562 = vst.msk [vmem:[#allocation4] sm:$0xff] %vm545, 0.0
        %563 = vst.msk [vmem:[#allocation4 + $0x8] sm:$0xff] %vm545, 0.0
        %564 = vst.msk [vmem:[#allocation4 + $0x10] sm:$0xff] %vm545, 0.0
        %565 = vst.msk [vmem:[#allocation4 + $0x18] sm:$0xff] %vm545, 0.0
        %566 = vst.msk [vmem:[#allocation4 + $0x20] sm:$0xff] %vm545, 0.0
        %567 = vst.msk [vmem:[#allocation4 + $0x28] sm:$0xff] %vm545, 0.0
        %568 = vst.msk [vmem:[#allocation4 + $0x30] sm:$0xff] %vm545, 0.0
        %569 = vst.msk [vmem:[#allocation4 + $0x38] sm:$0xff] %vm545, 0.0
        %570 = vst.msk [vmem:[#allocation4 + $0x40] sm:$0xff] %vm545, 0.0
        %571 = vst.msk [vmem:[#allocation4 + $0x48] sm:$0xff] %vm545, 0.0
        %572 = vst.msk [vmem:[#allocation4 + $0x50] sm:$0xff] %vm545, 0.0
        %573 = vst.msk [vmem:[#allocation4 + $0x58] sm:$0xff] %vm545, 0.0
        %574 = vst.msk [vmem:[#allocation4 + $0x60] sm:$0xff] %vm545, 0.0
        %575 = vst.msk [vmem:[#allocation4 + $0x68] sm:$0xff] %vm545, 0.0
        %576 = vst.msk [vmem:[#allocation4 + $0x70] sm:$0xff] %vm545, 0.0
        %577 = vst.msk [vmem:[#allocation4 + $0x78] sm:$0xff] %vm545, 0.0
        %578 = vst.msk [vmem:[#allocation5] sm:$0xff] %vm406, 0.0
        %579 = vst.msk [vmem:[#allocation5 + $0x8] sm:$0xff] %vm406, 0.0
        %580 = vst.msk [vmem:[#allocation5 + $0x10] sm:$0xff] %vm406, 0.0
        %581 = vst.msk [vmem:[#allocation5 + $0x18] sm:$0xff] %vm406, 0.0
        %582 = vst.msk [vmem:[#allocation5 + $0x20] sm:$0xff] %vm406, 0.0
        %583 = vst.msk [vmem:[#allocation5 + $0x28] sm:$0xff] %vm406, 0.0
        %584 = vst.msk [vmem:[#allocation5 + $0x30] sm:$0xff] %vm406, 0.0
        %585 = vst.msk [vmem:[#allocation5 + $0x38] sm:$0xff] %vm406, 0.0
        %586 = vst.msk [vmem:[#allocation5 + $0x40] sm:$0xff] %vm406, 0.0
        %587 = vst.msk [vmem:[#allocation5 + $0x48] sm:$0xff] %vm406, 0.0
        %588 = vst.msk [vmem:[#allocation5 + $0x50] sm:$0xff] %vm406, 0.0
        %589 = vst.msk [vmem:[#allocation5 + $0x58] sm:$0xff] %vm406, 0.0
        %590 = vst.msk [vmem:[#allocation5 + $0x60] sm:$0xff] %vm406, 0.0
        %591 = vst.msk [vmem:[#allocation5 + $0x68] sm:$0xff] %vm406, 0.0
        %592 = vst.msk [vmem:[#allocation5 + $0x70] sm:$0xff] %vm406, 0.0
        %593 = vst.msk [vmem:[#allocation5 + $0x78] sm:$0xff] %vm406, 0.0
      $region52: #{tpu_custom_call.1} parent=47 // pred_fallthru
        _
      %v594 = vld [vmem:[%s350] sm:$0xff]
      %v595 = vld [vmem:[%s350 + $0x8] sm:$0xff]
      %v596 = vld [vmem:[%s350 + $0x10] sm:$0xff]
      %v597 = vld [vmem:[%s350 + $0x18] sm:$0xff]
      %v598 = vld [vmem:[%s350 + $0x20] sm:$0xff]
      %v599 = vld [vmem:[%s350 + $0x28] sm:$0xff]
      %v600 = vld [vmem:[%s350 + $0x30] sm:$0xff]
      %v601 = vld [vmem:[%s350 + $0x38] sm:$0xff]
      %v602 = vpack.c.bf16 %v595, %v594
      %v603 = vpack.c.bf16 %v597, %v596
      %v604 = vpack.c.bf16 %v599, %v598
      %v605 = vpack.c.bf16 %v601, %v600
      %v606 = vld [vmem:[%s4] sm:$0xf]
      %v607 = vld [vmem:[%s4 + $0x4] sm:$0xf]
      %v608 = vld [vmem:[%s5] sm:$0x1]
      %v610 = vlaneseq
      %v611 = vshrl.u32 %v610, 7
      %v612 = vsub.s32 0, %v611
      %v613 = vrot.slane %v608, %v612
      %v617 = vunpack.c.l.b16 %v606
      %v618 = vunpack.c.l.b16 %v607
      %v619 = vpack.c.b16 %v618, %v617
      %vm621 = vcmask 130048
      %v623 = vsel %vm621, %v602, 0
      %v626 = vsel %vm621, %v603, 0
      %v629 = vsel %vm621, %v604, 0
      %v632 = vsel %vm621, %v605, 0
      %634 = vmatprep.subr.bf16.mxu0 0
      %635 = vmatpush1.bf16.msra.mxu0 %v619
      %636 = vmatprep.subr.bf16.mxu0 0
      %637 = vmatpush1.bf16.msra.mxu0 0
      %638 = vmatprep.subr.bf16.mxu0 0
      %639 = vmatpush1.bf16.msra.mxu0 0
      %640 = vmatprep.subr.bf16.mxu0 0
      %641 = vmatpush1.bf16.msra.mxu0 0
      %642 = vmatprep.subr.bf16.mxu0 0
      %643 = vmatpush1.bf16.msra.mxu0 0
      %644 = vmatprep.subr.bf16.mxu0 0
      %645 = vmatpush1.bf16.msra.mxu0 0
      %646 = vmatprep.subr.bf16.mxu0 0
      %647 = vmatpush1.bf16.msra.mxu0 0
      %648 = vmatprep.subr.bf16.mxu0 0
      %649 = vmatpush1.bf16.msra.mxu0 0
      %650 = vmatprep.subr.bf16.mxu0 0
      %651 = vmatpush1.bf16.msra.mxu0 0
      %652 = vmatprep.subr.bf16.mxu0 0
      %653 = vmatpush1.bf16.msra.mxu0 0
      %654 = vmatprep.subr.bf16.mxu0 0
      %655 = vmatpush1.bf16.msra.mxu0 0
      %656 = vmatprep.subr.bf16.mxu0 0
      %657 = vmatpush1.bf16.msra.mxu0 0
      %658 = vmatprep.subr.bf16.mxu0 0
      %659 = vmatpush1.bf16.msra.mxu0 0
      %660 = vmatprep.subr.bf16.mxu0 0
      %661 = vmatpush1.bf16.msra.mxu0 0
      %662 = vmatprep.subr.bf16.mxu0 0
      %663 = vmatpush1.bf16.msra.mxu0 0
      %664 = vmatprep.subr.bf16.mxu0 0
      %665 = vmatpush1.bf16.msra.mxu0 0
      %666 = vmatprep.mubr.bf16.mxu0 0
      %667 = vmatmul.mubr.bf16.gmra.mrb[0].mxu0 %v623
      %v668 = vpop.f32.mrb[0].mxu0
      %v669 = vadd.f32 %v613, %v668
      %v670 = vpop.f32.mrb[0].mxu0
      %v671 = vpop.f32.mrb[0].mxu0
      %v672 = vadd.f32 %v613, %v671
      %v673 = vpop.f32.mrb[0].mxu0
      %674 = vmatprep.mubr.bf16.mxu0 0
      %675 = vmatmul.mubr.bf16.gmra.mrb[0].mxu0 %v626
      %v676 = vpop.f32.mrb[0].mxu0
      %v677 = vadd.f32 %v613, %v676
      %v678 = vpop.f32.mrb[0].mxu0
      %v679 = vpop.f32.mrb[0].mxu0
      %v680 = vadd.f32 %v613, %v679
      %v681 = vpop.f32.mrb[0].mxu0
      %682 = vmatprep.mubr.bf16.mxu0 0
      %683 = vmatmul.mubr.bf16.gmra.mrb[0].mxu0 %v629
      %v684 = vpop.f32.mrb[0].mxu0
      %v685 = vadd.f32 %v613, %v684
      %v686 = vpop.f32.mrb[0].mxu0
      %v687 = vpop.f32.mrb[0].mxu0
      %v688 = vadd.f32 %v613, %v687
      %v689 = vpop.f32.mrb[0].mxu0
      %690 = vmatprep.mubr.bf16.mxu0 0
      %691 = vmatmul.mubr.bf16.gmra.mrb[0].mxu0 %v632
      %v692 = vpop.f32.mrb[0].mxu0
      %v693 = vadd.f32 %v613, %v692
      %v694 = vpop.f32.mrb[0].mxu0
      %v695 = vpop.f32.mrb[0].mxu0
      %v696 = vadd.f32 %v613, %v695
      %v697 = vpop.f32.mrb[0].mxu0
      %698 = vdwg.mxu0
      %v699 = vpack.c.bf16 %v672, %v669
      %v700 = vpack.c.bf16 %v680, %v677
      %v701 = vpack.c.bf16 %v688, %v685
      %v702 = vpack.c.bf16 %v696, %v693
      %v703 = vld [vmem:[#allocation2] sm:$0xff]
      %v704 = vld [vmem:[#allocation2 + $0x8] sm:$0xff]
      %v705 = vld [vmem:[#allocation2 + $0x10] sm:$0xff]
      %v706 = vld [vmem:[#allocation2 + $0x18] sm:$0xff]
      %v707 = vld [vmem:[#allocation2 + $0x20] sm:$0xff]
      %v708 = vld [vmem:[#allocation2 + $0x28] sm:$0xff]
      %v709 = vld [vmem:[#allocation2 + $0x30] sm:$0xff]
      %v710 = vld [vmem:[#allocation2 + $0x38] sm:$0xff]
      %715 = vrot.lane.b32.xlu0 %v699, 112
      %v716 = vpop.permute.xlu0 %715
      %717 = vrot.lane.b32.xlu0 %v700, 112
      %v718 = vpop.permute.xlu0 %717
      %719 = vrot.lane.b32.xlu0 %v701, 112
      %v720 = vpop.permute.xlu0 %719
      %721 = vrot.lane.b32.xlu0 %v702, 112
      %v722 = vpop.permute.xlu0 %721
      %vm723 = vcmask 15360
      %v725 = vsel %vm723, %v703, 0
      %v728 = vsel %vm723, %v704, 0
      %v731 = vsel %vm723, %v705, 0
      %v734 = vsel %vm723, %v706, 0
      %v737 = vsel %vm723, %v707, 0
      %v740 = vsel %vm723, %v708, 0
      %v743 = vsel %vm723, %v709, 0
      %v746 = vsel %vm723, %v710, 0
      %v749 = vsel %vm723, %v716, 0
      %v752 = vsel %vm723, %v718, 0
      %v755 = vsel %vm723, %v720, 0
      %v758 = vsel %vm723, %v722, 0
      %760 = vmatprep.subr.bf16.mxu0 0
      %761 = vmatpush1.bf16.xpose.msra.mxu0 %v749
      %762 = vmatprep.subr.bf16.mxu0 0
      %763 = vmatpush1.bf16.xpose.msra.mxu0 %v752
      %764 = vmatprep.subr.bf16.mxu0 0
      %765 = vmatpush1.bf16.xpose.msra.mxu0 %v755
      %766 = vmatprep.subr.bf16.mxu0 0
      %767 = vmatpush1.bf16.xpose.msra.mxu0 %v758
      %768 = vmatprep.subr.bf16.mxu0 0
      %769 = vmatpush1.bf16.xpose.msra.mxu0 0
      %770 = vmatprep.subr.bf16.mxu0 0
      %771 = vmatpush1.bf16.xpose.msra.mxu0 0
      %772 = vmatprep.subr.bf16.mxu0 0
      %773 = vmatpush1.bf16.xpose.msra.mxu0 0
      %774 = vmatprep.subr.bf16.mxu0 0
      %775 = vmatpush1.bf16.xpose.msra.mxu0 0
      %776 = vmatprep.subr.bf16.mxu0 0
      %777 = vmatpush1.bf16.xpose.msra.mxu0 0
      %778 = vmatprep.subr.bf16.mxu0 0
      %779 = vmatpush1.bf16.xpose.msra.mxu0 0
      %780 = vmatprep.subr.bf16.mxu0 0
      %781 = vmatpush1.bf16.xpose.msra.mxu0 0
      %782 = vmatprep.subr.bf16.mxu0 0
      %783 = vmatpush1.bf16.xpose.msra.mxu0 0
      %784 = vmatprep.subr.bf16.mxu0 0
      %785 = vmatpush1.bf16.xpose.msra.mxu0 0
      %786 = vmatprep.subr.bf16.mxu0 0
      %787 = vmatpush1.bf16.xpose.msra.mxu0 0
      %788 = vmatprep.subr.bf16.mxu0 0
      %789 = vmatpush1.bf16.xpose.msra.mxu0 0
      %790 = vmatprep.subr.bf16.mxu0 0
      %791 = vmatpush1.bf16.xpose.msra.mxu0 0
      %792 = vmatprep.mubr.bf16.mxu0 0
      %793 = vmatmul.mubr.bf16.gmra.mrb[0].mxu0 %v725
      %v794 = vpop.f32.mrb[0].mxu0
      %v795 = vadd.f32 0.0, %v794
      %v796 = vpop.f32.mrb[0].mxu0
      %v797 = vpop.f32.mrb[0].mxu0
      %v798 = vadd.f32 0.0, %v797
      %v799 = vpop.f32.mrb[0].mxu0
      %800 = vmatprep.mubr.bf16.mxu0 0
      %801 = vmatmul.mubr.bf16.gmra.mrb[0].mxu0 %v728
      %v802 = vpop.f32.mrb[0].mxu0
      %v803 = vadd.f32 0.0, %v802
      %v804 = vpop.f32.mrb[0].mxu0
      %v805 = vpop.f32.mrb[0].mxu0
      %v806 = vadd.f32 0.0, %v805
      %v807 = vpop.f32.mrb[0].mxu0
      %808 = vmatprep.mubr.bf16.mxu0 0
      %809 = vmatmul.mubr.bf16.gmra.mrb[0].mxu0 %v731
      %v810 = vpop.f32.mrb[0].mxu0
      %v811 = vadd.f32 0.0, %v810
      %v812 = vpop.f32.mrb[0].mxu0
      %v813 = vpop.f32.mrb[0].mxu0
      %v814 = vadd.f32 0.0, %v813
      %v815 = vpop.f32.mrb[0].mxu0
      %816 = vmatprep.mubr.bf16.mxu0 0
      %817 = vmatmul.mubr.bf16.gmra.mrb[0].mxu0 %v734
      %v818 = vpop.f32.mrb[0].mxu0
      %v819 = vadd.f32 0.0, %v818
      %v820 = vpop.f32.mrb[0].mxu0
      %v821 = vpop.f32.mrb[0].mxu0
      %v822 = vadd.f32 0.0, %v821
      %v823 = vpop.f32.mrb[0].mxu0
      %824 = vmatprep.mubr.bf16.mxu0 0
      %825 = vmatmul.mubr.bf16.gmra.mrb[0].mxu0 %v737
      %v826 = vpop.f32.mrb[0].mxu0
      %v827 = vadd.f32 0.0, %v826
      %v828 = vpop.f32.mrb[0].mxu0
      %v829 = vpop.f32.mrb[0].mxu0
      %v830 = vadd.f32 0.0, %v829
      %v831 = vpop.f32.mrb[0].mxu0
      %832 = vmatprep.mubr.bf16.mxu0 0
      %833 = vmatmul.mubr.bf16.gmra.mrb[0].mxu0 %v740
      %v834 = vpop.f32.mrb[0].mxu0
      %v835 = vadd.f32 0.0, %v834
      %v836 = vpop.f32.mrb[0].mxu0
      %v837 = vpop.f32.mrb[0].mxu0
      %v838 = vadd.f32 0.0, %v837
      %v839 = vpop.f32.mrb[0].mxu0
      %840 = vmatprep.mubr.bf16.mxu0 0
      %841 = vmatmul.mubr.bf16.gmra.mrb[0].mxu0 %v743
      %v842 = vpop.f32.mrb[0].mxu0
      %v843 = vadd.f32 0.0, %v842
      %v844 = vpop.f32.mrb[0].mxu0
      %v845 = vpop.f32.mrb[0].mxu0
      %v846 = vadd.f32 0.0, %v845
      %v847 = vpop.f32.mrb[0].mxu0
      %848 = vmatprep.mubr.bf16.mxu0 0
      %849 = vmatmul.mubr.bf16.gmra.mrb[0].mxu0 %v746
      %v850 = vpop.f32.mrb[0].mxu0
      %v851 = vadd.f32 0.0, %v850
      %v852 = vpop.f32.mrb[0].mxu0
      %v853 = vpop.f32.mrb[0].mxu0
      %v854 = vadd.f32 0.0, %v853
      %v855 = vpop.f32.mrb[0].mxu0
      %856 = vdwg.mxu0
      %v857 = vld [vmem:[#allocation3] sm:$0xff]
      %v858 = vld [vmem:[#allocation3 + $0x8] sm:$0xff]
      %v859 = vld [vmem:[#allocation3 + $0x10] sm:$0xff]
      %v860 = vld [vmem:[#allocation3 + $0x18] sm:$0xff]
      %v861 = vld [vmem:[#allocation3 + $0x20] sm:$0xff]
      %v862 = vld [vmem:[#allocation3 + $0x28] sm:$0xff]
      %v863 = vld [vmem:[#allocation3 + $0x30] sm:$0xff]
      %v864 = vld [vmem:[#allocation3 + $0x38] sm:$0xff]
      %v865 = vld [vmem:[#allocation3 + $0x40] sm:$0xff]
      %v866 = vld [vmem:[#allocation3 + $0x48] sm:$0xff]
      %v867 = vld [vmem:[#allocation3 + $0x50] sm:$0xff]
      %v868 = vld [vmem:[#allocation3 + $0x58] sm:$0xff]
      %v869 = vld [vmem:[#allocation3 + $0x60] sm:$0xff]
      %v870 = vld [vmem:[#allocation3 + $0x68] sm:$0xff]
      %v871 = vld [vmem:[#allocation3 + $0x70] sm:$0xff]
      %v872 = vld [vmem:[#allocation3 + $0x78] sm:$0xff]
      %vm873 = vcmask 523264
      %v874 = vsel %vm873, %v795, -inf
      %875 = vmax.xlane.f32.xlu0 %v874
      %v876 = vpop.xlane.xlu0 %875
      %v877 = vsel %vm873, %v798, -inf
      %878 = vmax.xlane.f32.xlu0 %v877
      %v879 = vpop.xlane.xlu0 %878
      %v880 = vsel %vm873, %v803, -inf
      %881 = vmax.xlane.f32.xlu0 %v880
      %v882 = vpop.xlane.xlu0 %881
      %v883 = vsel %vm873, %v806, -inf
      %884 = vmax.xlane.f32.xlu0 %v883
      %v885 = vpop.xlane.xlu0 %884
      %v886 = vsel %vm873, %v811, -inf
      %887 = vmax.xlane.f32.xlu0 %v886
      %v888 = vpop.xlane.xlu0 %887
      %v889 = vsel %vm873, %v814, -inf
      %890 = vmax.xlane.f32.xlu0 %v889
      %v891 = vpop.xlane.xlu0 %890
      %v892 = vsel %vm873, %v819, -inf
      %893 = vmax.xlane.f32.xlu0 %v892
      %v894 = vpop.xlane.xlu0 %893
      %v895 = vsel %vm873, %v822, -inf
      %896 = vmax.xlane.f32.xlu0 %v895
      %v897 = vpop.xlane.xlu0 %896
      %v898 = vsel %vm873, %v827, -inf
      %899 = vmax.xlane.f32.xlu0 %v898
      %v900 = vpop.xlane.xlu0 %899
      %v901 = vsel %vm873, %v830, -inf
      %902 = vmax.xlane.f32.xlu0 %v901
      %v903 = vpop.xlane.xlu0 %902
      %v904 = vsel %vm873, %v835, -inf
      %905 = vmax.xlane.f32.xlu0 %v904
      %v906 = vpop.xlane.xlu0 %905
      %v907 = vsel %vm873, %v838, -inf
      %908 = vmax.xlane.f32.xlu0 %v907
      %v909 = vpop.xlane.xlu0 %908
      %v910 = vsel %vm873, %v843, -inf
      %911 = vmax.xlane.f32.xlu0 %v910
      %v912 = vpop.xlane.xlu0 %911
      %v913 = vsel %vm873, %v846, -inf
      %914 = vmax.xlane.f32.xlu0 %v913
      %v915 = vpop.xlane.xlu0 %914
      %v916 = vsel %vm873, %v851, -inf
      %917 = vmax.xlane.f32.xlu0 %v916
      %v918 = vpop.xlane.xlu0 %917
      %v919 = vsel %vm873, %v854, -inf
      %920 = vmax.xlane.f32.xlu0 %v919
      %v921 = vpop.xlane.xlu0 %920
      %v922 = vmax.f32 %v857, %v876
      %v923 = vmax.f32 %v858, %v879
      %v924 = vmax.f32 %v859, %v882
      %v925 = vmax.f32 %v860, %v885
      %v926 = vmax.f32 %v861, %v888
      %v927 = vmax.f32 %v862, %v891
      %v928 = vmax.f32 %v863, %v894
      %v929 = vmax.f32 %v864, %v897
      %v930 = vmax.f32 %v865, %v900
      %v931 = vmax.f32 %v866, %v903
      %v932 = vmax.f32 %v867, %v906
      %v933 = vmax.f32 %v868, %v909
      %v934 = vmax.f32 %v869, %v912
      %v935 = vmax.f32 %v870, %v915
      %v936 = vmax.f32 %v871, %v918
      %v937 = vmax.f32 %v872, %v921
      %v938 = vsub.f32 %v857, %v922
      %v939 = vsub.f32 %v858, %v923
      %v940 = vsub.f32 %v859, %v924
      %v941 = vsub.f32 %v860, %v925
      %v942 = vsub.f32 %v861, %v926
      %v943 = vsub.f32 %v862, %v927
      %v944 = vsub.f32 %v863, %v928
      %v945 = vsub.f32 %v864, %v929
      %v946 = vsub.f32 %v865, %v930
      %v947 = vsub.f32 %v866, %v931
      %v948 = vsub.f32 %v867, %v932
      %v949 = vsub.f32 %v868, %v933
      %v950 = vsub.f32 %v869, %v934
      %v951 = vsub.f32 %v870, %v935
      %v952 = vsub.f32 %v871, %v936
      %v953 = vsub.f32 %v872, %v937
      %v954 = vmul.f32 %v938, 1.442695
      %v955 = vpow.pop %v954
      %v956 = vmul.f32 %v939, 1.442695
      %v957 = vpow.pop %v956
      %v958 = vmul.f32 %v940, 1.442695
      %v959 = vpow.pop %v958
      %v960 = vmul.f32 %v941, 1.442695
      %v961 = vpow.pop %v960
      %v962 = vmul.f32 %v942, 1.442695
      %v963 = vpow.pop %v962
      %v964 = vmul.f32 %v943, 1.442695
      %v965 = vpow.pop %v964
      %v966 = vmul.f32 %v944, 1.442695
      %v967 = vpow.pop %v966
      %v968 = vmul.f32 %v945, 1.442695
      %v969 = vpow.pop %v968
      %v970 = vmul.f32 %v946, 1.442695
      %v971 = vpow.pop %v970
      %v972 = vmul.f32 %v947, 1.442695
      %v973 = vpow.pop %v972
      %v974 = vmul.f32 %v948, 1.442695
      %v975 = vpow.pop %v974
      %v976 = vmul.f32 %v949, 1.442695
      %v977 = vpow.pop %v976
      %v978 = vmul.f32 %v950, 1.442695
      %v979 = vpow.pop %v978
      %v980 = vmul.f32 %v951, 1.442695
      %v981 = vpow.pop %v980
      %v982 = vmul.f32 %v952, 1.442695
      %v983 = vpow.pop %v982
      %v984 = vmul.f32 %v953, 1.442695
      %v985 = vpow.pop %v984
      %987 = vset.pattern.permute.xlu0 0
      %988 = vperm.xlu0 %987, %v922
      %v989 = vpop.permute.xlu0 %988
      %992 = vset.pattern.permute.xlu0 0
      %993 = vperm.xlu0 %992, %v923
      %v994 = vpop.permute.xlu0 %993
      %997 = vset.pattern.permute.xlu0 0
      %998 = vperm.xlu0 %997, %v924
      %v999 = vpop.permute.xlu0 %998
      %1002 = vset.pattern.permute.xlu0 0
      %1003 = vperm.xlu0 %1002, %v925
      %v1004 = vpop.permute.xlu0 %1003
      %1007 = vset.pattern.permute.xlu0 0
      %1008 = vperm.xlu0 %1007, %v926
      %v1009 = vpop.permute.xlu0 %1008
      %1012 = vset.pattern.permute.xlu0 0
      %1013 = vperm.xlu0 %1012, %v927
      %v1014 = vpop.permute.xlu0 %1013
      %1017 = vset.pattern.permute.xlu0 0
      %1018 = vperm.xlu0 %1017, %v928
      %v1019 = vpop.permute.xlu0 %1018
      %1022 = vset.pattern.permute.xlu0 0
      %1023 = vperm.xlu0 %1022, %v929
      %v1024 = vpop.permute.xlu0 %1023
      %1027 = vset.pattern.permute.xlu0 0
      %1028 = vperm.xlu0 %1027, %v930
      %v1029 = vpop.permute.xlu0 %1028
      %1032 = vset.pattern.permute.xlu0 0
      %1033 = vperm.xlu0 %1032, %v931
      %v1034 = vpop.permute.xlu0 %1033
      %1037 = vset.pattern.permute.xlu0 0
      %1038 = vperm.xlu0 %1037, %v932
      %v1039 = vpop.permute.xlu0 %1038
      %1042 = vset.pattern.permute.xlu0 0
      %1043 = vperm.xlu0 %1042, %v933
      %v1044 = vpop.permute.xlu0 %1043
      %1047 = vset.pattern.permute.xlu0 0
      %1048 = vperm.xlu0 %1047, %v934
      %v1049 = vpop.permute.xlu0 %1048
      %1052 = vset.pattern.permute.xlu0 0
      %1053 = vperm.xlu0 %1052, %v935
      %v1054 = vpop.permute.xlu0 %1053
      %1057 = vset.pattern.permute.xlu0 0
      %1058 = vperm.xlu0 %1057, %v936
      %v1059 = vpop.permute.xlu0 %1058
      %1062 = vset.pattern.permute.xlu0 0
      %1063 = vperm.xlu0 %1062, %v937
      %v1064 = vpop.permute.xlu0 %1063
      %v1066 = vsub.f32 %v795, %v989
      %v1067 = vsub.f32 %v798, %v994
      %v1068 = vsub.f32 %v803, %v999
      %v1069 = vsub.f32 %v806, %v1004
      %v1070 = vsub.f32 %v811, %v1009
      %v1071 = vsub.f32 %v814, %v1014
      %v1072 = vsub.f32 %v819, %v1019
      %v1073 = vsub.f32 %v822, %v1024
      %v1074 = vsub.f32 %v827, %v1029
      %v1075 = vsub.f32 %v830, %v1034
      %v1076 = vsub.f32 %v835, %v1039
      %v1077 = vsub.f32 %v838, %v1044
      %v1078 = vsub.f32 %v843, %v1049
      %v1079 = vsub.f32 %v846, %v1054
      %v1080 = vsub.f32 %v851, %v1059
      %v1081 = vsub.f32 %v854, %v1064
      %v1082 = vmul.f32 %v1066, 1.442695
      %v1083 = vpow.pop %v1082
      %v1084 = vmul.f32 %v1067, 1.442695
      %v1085 = vpow.pop %v1084
      %v1086 = vmul.f32 %v1068, 1.442695
      %v1087 = vpow.pop %v1086
      %v1088 = vmul.f32 %v1069, 1.442695
      %v1089 = vpow.pop %v1088
      %v1090 = vmul.f32 %v1070, 1.442695
      %v1091 = vpow.pop %v1090
      %v1092 = vmul.f32 %v1071, 1.442695
      %v1093 = vpow.pop %v1092
      %v1094 = vmul.f32 %v1072, 1.442695
      %v1095 = vpow.pop %v1094
      %v1096 = vmul.f32 %v1073, 1.442695
      %v1097 = vpow.pop %v1096
      %v1098 = vmul.f32 %v1074, 1.442695
      %v1099 = vpow.pop %v1098
      %v1100 = vmul.f32 %v1075, 1.442695
      %v1101 = vpow.pop %v1100
      %v1102 = vmul.f32 %v1076, 1.442695
      %v1103 = vpow.pop %v1102
      %v1104 = vmul.f32 %v1077, 1.442695
      %v1105 = vpow.pop %v1104
      %v1106 = vmul.f32 %v1078, 1.442695
      %v1107 = vpow.pop %v1106
      %v1108 = vmul.f32 %v1079, 1.442695
      %v1109 = vpow.pop %v1108
      %v1110 = vmul.f32 %v1080, 1.442695
      %v1111 = vpow.pop %v1110
      %v1112 = vmul.f32 %v1081, 1.442695
      %v1113 = vpow.pop %v1112
      %v1114 = vld [vmem:[#allocation4] sm:$0xff]
      %v1115 = vld [vmem:[#allocation4 + $0x8] sm:$0xff]
      %v1116 = vld [vmem:[#allocation4 + $0x10] sm:$0xff]
      %v1117 = vld [vmem:[#allocation4 + $0x18] sm:$0xff]
      %v1118 = vld [vmem:[#allocation4 + $0x20] sm:$0xff]
      %v1119 = vld [vmem:[#allocation4 + $0x28] sm:$0xff]
      %v1120 = vld [vmem:[#allocation4 + $0x30] sm:$0xff]
      %v1121 = vld [vmem:[#allocation4 + $0x38] sm:$0xff]
      %v1122 = vld [vmem:[#allocation4 + $0x40] sm:$0xff]
      %v1123 = vld [vmem:[#allocation4 + $0x48] sm:$0xff]
      %v1124 = vld [vmem:[#allocation4 + $0x50] sm:$0xff]
      %v1125 = vld [vmem:[#allocation4 + $0x58] sm:$0xff]
      %v1126 = vld [vmem:[#allocation4 + $0x60] sm:$0xff]
      %v1127 = vld [vmem:[#allocation4 + $0x68] sm:$0xff]
      %v1128 = vld [vmem:[#allocation4 + $0x70] sm:$0xff]
      %v1129 = vld [vmem:[#allocation4 + $0x78] sm:$0xff]
      %v1130 = vmul.f32 %v955, %v1114
      %v1131 = vmul.f32 %v957, %v1115
      %v1132 = vmul.f32 %v959, %v1116
      %v1133 = vmul.f32 %v961, %v1117
      %v1134 = vmul.f32 %v963, %v1118
      %v1135 = vmul.f32 %v965, %v1119
      %v1136 = vmul.f32 %v967, %v1120
      %v1137 = vmul.f32 %v969, %v1121
      %v1138 = vmul.f32 %v971, %v1122
      %v1139 = vmul.f32 %v973, %v1123
      %v1140 = vmul.f32 %v975, %v1124
      %v1141 = vmul.f32 %v977, %v1125
      %v1142 = vmul.f32 %v979, %v1126
      %v1143 = vmul.f32 %v981, %v1127
      %v1144 = vmul.f32 %v983, %v1128
      %v1145 = vmul.f32 %v985, %v1129
      %v1146 = vsel %vm873, %v1083, 0.0
      %1147 = vadd.xlane.f32.xlu0 %v1146
      %v1148 = vpop.xlane.xlu0 %1147
      %v1149 = vsel %vm873, %v1085, 0.0
      %1150 = vadd.xlane.f32.xlu0 %v1149
      %v1151 = vpop.xlane.xlu0 %1150
      %v1152 = vsel %vm873, %v1087, 0.0
      %1153 = vadd.xlane.f32.xlu0 %v1152
      %v1154 = vpop.xlane.xlu0 %1153
      %v1155 = vsel %vm873, %v1089, 0.0
      %1156 = vadd.xlane.f32.xlu0 %v1155
      %v1157 = vpop.xlane.xlu0 %1156
      %v1158 = vsel %vm873, %v1091, 0.0
      %1159 = vadd.xlane.f32.xlu0 %v1158
      %v1160 = vpop.xlane.xlu0 %1159
      %v1161 = vsel %vm873, %v1093, 0.0
      %1162 = vadd.xlane.f32.xlu0 %v1161
      %v1163 = vpop.xlane.xlu0 %1162
      %v1164 = vsel %vm873, %v1095, 0.0
      %1165 = vadd.xlane.f32.xlu0 %v1164
      %v1166 = vpop.xlane.xlu0 %1165
      %v1167 = vsel %vm873, %v1097, 0.0
      %1168 = vadd.xlane.f32.xlu0 %v1167
      %v1169 = vpop.xlane.xlu0 %1168
      %v1170 = vsel %vm873, %v1099, 0.0
      %1171 = vadd.xlane.f32.xlu0 %v1170
      %v1172 = vpop.xlane.xlu0 %1171
      %v1173 = vsel %vm873, %v1101, 0.0
      %1174 = vadd.xlane.f32.xlu0 %v1173
      %v1175 = vpop.xlane.xlu0 %1174
      %v1176 = vsel %vm873, %v1103, 0.0
      %1177 = vadd.xlane.f32.xlu0 %v1176
      %v1178 = vpop.xlane.xlu0 %1177
      %v1179 = vsel %vm873, %v1105, 0.0
      %1180 = vadd.xlane.f32.xlu0 %v1179
      %v1181 = vpop.xlane.xlu0 %1180
      %v1182 = vsel %vm873, %v1107, 0.0
      %1183 = vadd.xlane.f32.xlu0 %v1182
      %v1184 = vpop.xlane.xlu0 %1183
      %v1185 = vsel %vm873, %v1109, 0.0
      %1186 = vadd.xlane.f32.xlu0 %v1185
      %v1187 = vpop.xlane.xlu0 %1186
      %v1188 = vsel %vm873, %v1111, 0.0
      %1189 = vadd.xlane.f32.xlu0 %v1188
      %v1190 = vpop.xlane.xlu0 %1189
      %v1191 = vsel %vm873, %v1113, 0.0
      %1192 = vadd.xlane.f32.xlu0 %v1191
      %v1193 = vpop.xlane.xlu0 %1192
      %v1194 = vadd.f32 %v1130, %v1148
      %v1195 = vadd.f32 %v1131, %v1151
      %v1196 = vadd.f32 %v1132, %v1154
      %v1197 = vadd.f32 %v1133, %v1157
      %v1198 = vadd.f32 %v1134, %v1160
      %v1199 = vadd.f32 %v1135, %v1163
      %v1200 = vadd.f32 %v1136, %v1166
      %v1201 = vadd.f32 %v1137, %v1169
      %v1202 = vadd.f32 %v1138, %v1172
      %v1203 = vadd.f32 %v1139, %v1175
      %v1204 = vadd.f32 %v1140, %v1178
      %v1205 = vadd.f32 %v1141, %v1181
      %v1206 = vadd.f32 %v1142, %v1184
      %v1207 = vadd.f32 %v1143, %v1187
      %v1208 = vadd.f32 %v1144, %v1190
      %v1209 = vadd.f32 %v1145, %v1193
      %vm1210 = vcmask 7168
      %1211 = vst.msk [vmem:[#allocation4] sm:$0xff] %vm1210, %v1194
      %1212 = vst.msk [vmem:[#allocation4 + $0x8] sm:$0xff] %vm1210, %v1195
      %1213 = vst.msk [vmem:[#allocation4 + $0x10] sm:$0xff] %vm1210, %v1196
      %1214 = vst.msk [vmem:[#allocation4 + $0x18] sm:$0xff] %vm1210, %v1197
      %1215 = vst.msk [vmem:[#allocation4 + $0x20] sm:$0xff] %vm1210, %v1198
      %1216 = vst.msk [vmem:[#allocation4 + $0x28] sm:$0xff] %vm1210, %v1199
      %1217 = vst.msk [vmem:[#allocation4 + $0x30] sm:$0xff] %vm1210, %v1200
      %1218 = vst.msk [vmem:[#allocation4 + $0x38] sm:$0xff] %vm1210, %v1201
      %1219 = vst.msk [vmem:[#allocation4 + $0x40] sm:$0xff] %vm1210, %v1202
      %1220 = vst.msk [vmem:[#allocation4 + $0x48] sm:$0xff] %vm1210, %v1203
      %1221 = vst.msk [vmem:[#allocation4 + $0x50] sm:$0xff] %vm1210, %v1204
      %1222 = vst.msk [vmem:[#allocation4 + $0x58] sm:$0xff] %vm1210, %v1205
      %1223 = vst.msk [vmem:[#allocation4 + $0x60] sm:$0xff] %vm1210, %v1206
      %1224 = vst.msk [vmem:[#allocation4 + $0x68] sm:$0xff] %vm1210, %v1207
      %1225 = vst.msk [vmem:[#allocation4 + $0x70] sm:$0xff] %vm1210, %v1208
      %1226 = vst.msk [vmem:[#allocation4 + $0x78] sm:$0xff] %vm1210, %v1209
      %v1227 = vld [vmem:[#allocation5] sm:$0xff]
      %v1228 = vld [vmem:[#allocation5 + $0x8] sm:$0xff]
      %v1229 = vld [vmem:[#allocation5 + $0x10] sm:$0xff]
      %v1230 = vld [vmem:[#allocation5 + $0x18] sm:$0xff]
      %v1231 = vld [vmem:[#allocation5 + $0x20] sm:$0xff]
      %v1232 = vld [vmem:[#allocation5 + $0x28] sm:$0xff]
      %v1233 = vld [vmem:[#allocation5 + $0x30] sm:$0xff]
      %v1234 = vld [vmem:[#allocation5 + $0x38] sm:$0xff]
      %v1235 = vld [vmem:[#allocation5 + $0x40] sm:$0xff]
      %v1236 = vld [vmem:[#allocation5 + $0x48] sm:$0xff]
      %v1237 = vld [vmem:[#allocation5 + $0x50] sm:$0xff]
      %v1238 = vld [vmem:[#allocation5 + $0x58] sm:$0xff]
      %v1239 = vld [vmem:[#allocation5 + $0x60] sm:$0xff]
      %v1240 = vld [vmem:[#allocation5 + $0x68] sm:$0xff]
      %v1241 = vld [vmem:[#allocation5 + $0x70] sm:$0xff]
      %v1242 = vld [vmem:[#allocation5 + $0x78] sm:$0xff]
      %1244 = vset.pattern.permute.xlu0 0
      %1245 = vperm.xlu0 %1244, %v955
      %v1246 = vpop.permute.xlu0 %1245
      %1249 = vset.pattern.permute.xlu0 0
      %1250 = vperm.xlu0 %1249, %v957
      %v1251 = vpop.permute.xlu0 %1250
      %1254 = vset.pattern.permute.xlu0 0
      %1255 = vperm.xlu0 %1254, %v959
      %v1256 = vpop.permute.xlu0 %1255
      %1259 = vset.pattern.permute.xlu0 0
      %1260 = vperm.xlu0 %1259, %v961
      %v1261 = vpop.permute.xlu0 %1260
      %1264 = vset.pattern.permute.xlu0 0
      %1265 = vperm.xlu0 %1264, %v963
      %v1266 = vpop.permute.xlu0 %1265
      %1269 = vset.pattern.permute.xlu0 0
      %1270 = vperm.xlu0 %1269, %v965
      %v1271 = vpop.permute.xlu0 %1270
      %1274 = vset.pattern.permute.xlu0 0
      %1275 = vperm.xlu0 %1274, %v967
      %v1276 = vpop.permute.xlu0 %1275
      %1279 = vset.pattern.permute.xlu0 0
      %1280 = vperm.xlu0 %1279, %v969
      %v1281 = vpop.permute.xlu0 %1280
      %1284 = vset.pattern.permute.xlu0 0
      %1285 = vperm.xlu0 %1284, %v971
      %v1286 = vpop.permute.xlu0 %1285
      %1289 = vset.pattern.permute.xlu0 0
      %1290 = vperm.xlu0 %1289, %v973
      %v1291 = vpop.permute.xlu0 %1290
      %1294 = vset.pattern.permute.xlu0 0
      %1295 = vperm.xlu0 %1294, %v975
      %v1296 = vpop.permute.xlu0 %1295
      %1299 = vset.pattern.permute.xlu0 0
      %1300 = vperm.xlu0 %1299, %v977
      %v1301 = vpop.permute.xlu0 %1300
      %1304 = vset.pattern.permute.xlu0 0
      %1305 = vperm.xlu0 %1304, %v979
      %v1306 = vpop.permute.xlu0 %1305
      %1309 = vset.pattern.permute.xlu0 0
      %1310 = vperm.xlu0 %1309, %v981
      %v1311 = vpop.permute.xlu0 %1310
      %1314 = vset.pattern.permute.xlu0 0
      %1315 = vperm.xlu0 %1314, %v983
      %v1316 = vpop.permute.xlu0 %1315
      %1319 = vset.pattern.permute.xlu0 0
      %1320 = vperm.xlu0 %1319, %v985
      %v1321 = vpop.permute.xlu0 %1320
      %v1323 = vmul.f32 %v1246, %v1227
      %v1324 = vmul.f32 %v1251, %v1228
      %v1325 = vmul.f32 %v1256, %v1229
      %v1326 = vmul.f32 %v1261, %v1230
      %v1327 = vmul.f32 %v1266, %v1231
      %v1328 = vmul.f32 %v1271, %v1232
      %v1329 = vmul.f32 %v1276, %v1233
      %v1330 = vmul.f32 %v1281, %v1234
      %v1331 = vmul.f32 %v1286, %v1235
      %v1332 = vmul.f32 %v1291, %v1236
      %v1333 = vmul.f32 %v1296, %v1237
      %v1334 = vmul.f32 %v1301, %v1238
      %v1335 = vmul.f32 %v1306, %v1239
      %v1336 = vmul.f32 %v1311, %v1240
      %v1337 = vmul.f32 %v1316, %v1241
      %v1338 = vmul.f32 %v1321, %v1242
      %v1339 = vpack.c.bf16 %v1085, %v1083
      %v1340 = vpack.c.bf16 %v1089, %v1087
      %v1341 = vpack.c.bf16 %v1093, %v1091
      %v1342 = vpack.c.bf16 %v1097, %v1095
      %v1343 = vpack.c.bf16 %v1101, %v1099
      %v1344 = vpack.c.bf16 %v1105, %v1103
      %v1345 = vpack.c.bf16 %v1109, %v1107
      %v1346 = vpack.c.bf16 %v1113, %v1111
      %v1348 = vsel %vm873, %v1339, 0
      %v1351 = vsel %vm873, %v1340, 0
      %v1354 = vsel %vm873, %v1341, 0
      %v1357 = vsel %vm873, %v1342, 0
      %v1360 = vsel %vm873, %v1343, 0
      %v1363 = vsel %vm873, %v1344, 0
      %v1366 = vsel %vm873, %v1345, 0
      %v1369 = vsel %vm873, %v1346, 0
      %1371 = vmatprep.subr.bf16.mxu0 0
      %1372 = vmatpush1.bf16.msra.mxu0 %v699
      %1373 = vmatprep.subr.bf16.mxu0 0
      %1374 = vmatpush1.bf16.msra.mxu0 %v700
      %1375 = vmatprep.subr.bf16.mxu0 0
      %1376 = vmatpush1.bf16.msra.mxu0 %v701
      %1377 = vmatprep.subr.bf16.mxu0 0
      %1378 = vmatpush1.bf16.msra.mxu0 %v702
      %1379 = vmatprep.subr.bf16.mxu0 0
      %1380 = vmatpush1.bf16.msra.mxu0 0
      %1381 = vmatprep.subr.bf16.mxu0 0
      %1382 = vmatpush1.bf16.msra.mxu0 0
      %1383 = vmatprep.subr.bf16.mxu0 0
      %1384 = vmatpush1.bf16.msra.mxu0 0
      %1385 = vmatprep.subr.bf16.mxu0 0
      %1386 = vmatpush1.bf16.msra.mxu0 0
      %1387 = vmatprep.subr.bf16.mxu0 0
      %1388 = vmatpush1.bf16.msra.mxu0 0
      %1389 = vmatprep.subr.bf16.mxu0 0
      %1390 = vmatpush1.bf16.msra.mxu0 0
      %1391 = vmatprep.subr.bf16.mxu0 0
      %1392 = vmatpush1.bf16.msra.mxu0 0
      %1393 = vmatprep.subr.bf16.mxu0 0
      %1394 = vmatpush1.bf16.msra.mxu0 0
      %1395 = vmatprep.subr.bf16.mxu0 0
      %1396 = vmatpush1.bf16.msra.mxu0 0
      %1397 = vmatprep.subr.bf16.mxu0 0
      %1398 = vmatpush1.bf16.msra.mxu0 0
      %1399 = vmatprep.subr.bf16.mxu0 0
      %1400 = vmatpush1.bf16.msra.mxu0 0
      %1401 = vmatprep.subr.bf16.mxu0 0
      %1402 = vmatpush1.bf16.msra.mxu0 0
      %1403 = vmatprep.mubr.bf16.mxu0 0
      %1404 = vmatmul.mubr.bf16.gmra.mrb[0].mxu0 %v1348
      %v1405 = vpop.f32.mrb[0].mxu0
      %v1406 = vadd.f32 0.0, %v1405
      %v1407 = vpop.f32.mrb[0].mxu0
      %v1408 = vpop.f32.mrb[0].mxu0
      %v1409 = vadd.f32 0.0, %v1408
      %v1410 = vpop.f32.mrb[0].mxu0
      %1411 = vmatprep.mubr.bf16.mxu0 0
      %1412 = vmatmul.mubr.bf16.gmra.mrb[0].mxu0 %v1351
      %v1413 = vpop.f32.mrb[0].mxu0
      %v1414 = vadd.f32 0.0, %v1413
      %v1415 = vpop.f32.mrb[0].mxu0
      %v1416 = vpop.f32.mrb[0].mxu0
      %v1417 = vadd.f32 0.0, %v1416
      %v1418 = vpop.f32.mrb[0].mxu0
      %1419 = vmatprep.mubr.bf16.mxu0 0
      %1420 = vmatmul.mubr.bf16.gmra.mrb[0].mxu0 %v1354
      %v1421 = vpop.f32.mrb[0].mxu0
      %v1422 = vadd.f32 0.0, %v1421
      %v1423 = vpop.f32.mrb[0].mxu0
      %v1424 = vpop.f32.mrb[0].mxu0
      %v1425 = vadd.f32 0.0, %v1424
      %v1426 = vpop.f32.mrb[0].mxu0
      %1427 = vmatprep.mubr.bf16.mxu0 0
      %1428 = vmatmul.mubr.bf16.gmra.mrb[0].mxu0 %v1357
      %v1429 = vpop.f32.mrb[0].mxu0
      %v1430 = vadd.f32 0.0, %v1429
      %v1431 = vpop.f32.mrb[0].mxu0
      %v1432 = vpop.f32.mrb[0].mxu0
      %v1433 = vadd.f32 0.0, %v1432
      %v1434 = vpop.f32.mrb[0].mxu0
      %1435 = vmatprep.mubr.bf16.mxu0 0
      %1436 = vmatmul.mubr.bf16.gmra.mrb[0].mxu0 %v1360
      %v1437 = vpop.f32.mrb[0].mxu0
      %v1438 = vadd.f32 0.0, %v1437
      %v1439 = vpop.f32.mrb[0].mxu0
      %v1440 = vpop.f32.mrb[0].mxu0
      %v1441 = vadd.f32 0.0, %v1440
      %v1442 = vpop.f32.mrb[0].mxu0
      %1443 = vmatprep.mubr.bf16.mxu0 0
      %1444 = vmatmul.mubr.bf16.gmra.mrb[0].mxu0 %v1363
      %v1445 = vpop.f32.mrb[0].mxu0
      %v1446 = vadd.f32 0.0, %v1445
      %v1447 = vpop.f32.mrb[0].mxu0
      %v1448 = vpop.f32.mrb[0].mxu0
      %v1449 = vadd.f32 0.0, %v1448
      %v1450 = vpop.f32.mrb[0].mxu0
      %1451 = vmatprep.mubr.bf16.mxu0 0
      %1452 = vmatmul.mubr.bf16.gmra.mrb[0].mxu0 %v1366
      %v1453 = vpop.f32.mrb[0].mxu0
      %v1454 = vadd.f32 0.0, %v1453
      %v1455 = vpop.f32.mrb[0].mxu0
      %v1456 = vpop.f32.mrb[0].mxu0
      %v1457 = vadd.f32 0.0, %v1456
      %v1458 = vpop.f32.mrb[0].mxu0
      %1459 = vmatprep.mubr.bf16.mxu0 0
      %1460 = vmatmul.mubr.bf16.gmra.mrb[0].mxu0 %v1369
      %v1461 = vpop.f32.mrb[0].mxu0
      %v1462 = vadd.f32 0.0, %v1461
      %v1463 = vpop.f32.mrb[0].mxu0
      %v1464 = vpop.f32.mrb[0].mxu0
      %v1465 = vadd.f32 0.0, %v1464
      %v1466 = vpop.f32.mrb[0].mxu0
      %1467 = vdwg.mxu0
      %v1468 = vadd.f32 %v1323, %v1406
      %v1469 = vadd.f32 %v1324, %v1409
      %v1470 = vadd.f32 %v1325, %v1414
      %v1471 = vadd.f32 %v1326, %v1417
      %v1472 = vadd.f32 %v1327, %v1422
      %v1473 = vadd.f32 %v1328, %v1425
      %v1474 = vadd.f32 %v1329, %v1430
      %v1475 = vadd.f32 %v1330, %v1433
      %v1476 = vadd.f32 %v1331, %v1438
      %v1477 = vadd.f32 %v1332, %v1441
      %v1478 = vadd.f32 %v1333, %v1446
      %v1479 = vadd.f32 %v1334, %v1449
      %v1480 = vadd.f32 %v1335, %v1454
      %v1481 = vadd.f32 %v1336, %v1457
      %v1482 = vadd.f32 %v1337, %v1462
      %v1483 = vadd.f32 %v1338, %v1465
      %1484 = vst.msk [vmem:[#allocation5] sm:$0xff] %vm621, %v1468
      %1485 = vst.msk [vmem:[#allocation5 + $0x8] sm:$0xff] %vm621, %v1469
      %1486 = vst.msk [vmem:[#allocation5 + $0x10] sm:$0xff] %vm621, %v1470
      %1487 = vst.msk [vmem:[#allocation5 + $0x18] sm:$0xff] %vm621, %v1471
      %1488 = vst.msk [vmem:[#allocation5 + $0x20] sm:$0xff] %vm621, %v1472
      %1489 = vst.msk [vmem:[#allocation5 + $0x28] sm:$0xff] %vm621, %v1473
      %1490 = vst.msk [vmem:[#allocation5 + $0x30] sm:$0xff] %vm621, %v1474
      %1491 = vst.msk [vmem:[#allocation5 + $0x38] sm:$0xff] %vm621, %v1475
      %1492 = vst.msk [vmem:[#allocation5 + $0x40] sm:$0xff] %vm621, %v1476
      %1493 = vst.msk [vmem:[#allocation5 + $0x48] sm:$0xff] %vm621, %v1477
      %1494 = vst.msk [vmem:[#allocation5 + $0x50] sm:$0xff] %vm621, %v1478
      %1495 = vst.msk [vmem:[#allocation5 + $0x58] sm:$0xff] %vm621, %v1479
      %1496 = vst.msk [vmem:[#allocation5 + $0x60] sm:$0xff] %vm621, %v1480
      %1497 = vst.msk [vmem:[#allocation5 + $0x68] sm:$0xff] %vm621, %v1481
      %1498 = vst.msk [vmem:[#allocation5 + $0x70] sm:$0xff] %vm621, %v1482
      %1499 = vst.msk [vmem:[#allocation5 + $0x78] sm:$0xff] %vm621, %v1483
      %1500 = vst.msk [vmem:[#allocation3] sm:$0xff] %vm1210, %v922
      %1501 = vst.msk [vmem:[#allocation3 + $0x8] sm:$0xff] %vm1210, %v923
      %1502 = vst.msk [vmem:[#allocation3 + $0x10] sm:$0xff] %vm1210, %v924
      %1503 = vst.msk [vmem:[#allocation3 + $0x18] sm:$0xff] %vm1210, %v925
      %1504 = vst.msk [vmem:[#allocation3 + $0x20] sm:$0xff] %vm1210, %v926
      %1505 = vst.msk [vmem:[#allocation3 + $0x28] sm:$0xff] %vm1210, %v927
      %1506 = vst.msk [vmem:[#allocation3 + $0x30] sm:$0xff] %vm1210, %v928
      %1507 = vst.msk [vmem:[#allocation3 + $0x38] sm:$0xff] %vm1210, %v929
      %1508 = vst.msk [vmem:[#allocation3 + $0x40] sm:$0xff] %vm1210, %v930
      %1509 = vst.msk [vmem:[#allocation3 + $0x48] sm:$0xff] %vm1210, %v931
      %1510 = vst.msk [vmem:[#allocation3 + $0x50] sm:$0xff] %vm1210, %v932
      %1511 = vst.msk [vmem:[#allocation3 + $0x58] sm:$0xff] %vm1210, %v933
      %1512 = vst.msk [vmem:[#allocation3 + $0x60] sm:$0xff] %vm1210, %v934
      %1513 = vst.msk [vmem:[#allocation3 + $0x68] sm:$0xff] %vm1210, %v935
      %1514 = vst.msk [vmem:[#allocation3 + $0x70] sm:$0xff] %vm1210, %v936
      %1515 = vst.msk [vmem:[#allocation3 + $0x78] sm:$0xff] %vm1210, %v937
      %p1516 = scmp.eq.s32.totalorder %s26, 3
      // Predicated region
      $region53: #{tpu_custom_call.1} parent=47 // pred_check
        %p1517 = pneg %p1516
      $region54: #{tpu_custom_call.1} parent=47 // pred_check_branch
        %1519 = sbr.rel (%p1517) target = $region56
      $region55: #{tpu_custom_call.1} parent=47 // pred_region
        %v1520 = vld [vmem:[#allocation4] sm:$0xff]
        %v1521 = vld [vmem:[#allocation4 + $0x8] sm:$0xff]
        %v1522 = vld [vmem:[#allocation4 + $0x10] sm:$0xff]
        %v1523 = vld [vmem:[#allocation4 + $0x18] sm:$0xff]
        %v1524 = vld [vmem:[#allocation4 + $0x20] sm:$0xff]
        %v1525 = vld [vmem:[#allocation4 + $0x28] sm:$0xff]
        %v1526 = vld [vmem:[#allocation4 + $0x30] sm:$0xff]
        %v1527 = vld [vmem:[#allocation4 + $0x38] sm:$0xff]
        %v1528 = vld [vmem:[#allocation4 + $0x40] sm:$0xff]
        %v1529 = vld [vmem:[#allocation4 + $0x48] sm:$0xff]
        %v1530 = vld [vmem:[#allocation4 + $0x50] sm:$0xff]
        %v1531 = vld [vmem:[#allocation4 + $0x58] sm:$0xff]
        %v1532 = vld [vmem:[#allocation4 + $0x60] sm:$0xff]
        %v1533 = vld [vmem:[#allocation4 + $0x68] sm:$0xff]
        %v1534 = vld [vmem:[#allocation4 + $0x70] sm:$0xff]
        %v1535 = vld [vmem:[#allocation4 + $0x78] sm:$0xff]
        %v1536 = vrcp.pop %v1520
        %v1537 = vrcp.pop %v1521
        %v1538 = vrcp.pop %v1522
        %v1539 = vrcp.pop %v1523
        %v1540 = vrcp.pop %v1524
        %v1541 = vrcp.pop %v1525
        %v1542 = vrcp.pop %v1526
        %v1543 = vrcp.pop %v1527
        %v1544 = vrcp.pop %v1528
        %v1545 = vrcp.pop %v1529
        %v1546 = vrcp.pop %v1530
        %v1547 = vrcp.pop %v1531
        %v1548 = vrcp.pop %v1532
        %v1549 = vrcp.pop %v1533
        %v1550 = vrcp.pop %v1534
        %v1551 = vrcp.pop %v1535
        %v1552 = vld [vmem:[#allocation5] sm:$0xff]
        %v1553 = vld [vmem:[#allocation5 + $0x8] sm:$0xff]
        %v1554 = vld [vmem:[#allocation5 + $0x10] sm:$0xff]
        %v1555 = vld [vmem:[#allocation5 + $0x18] sm:$0xff]
        %v1556 = vld [vmem:[#allocation5 + $0x20] sm:$0xff]
        %v1557 = vld [vmem:[#allocation5 + $0x28] sm:$0xff]
        %v1558 = vld [vmem:[#allocation5 + $0x30] sm:$0xff]
        %v1559 = vld [vmem:[#allocation5 + $0x38] sm:$0xff]
        %v1560 = vld [vmem:[#allocation5 + $0x40] sm:$0xff]
        %v1561 = vld [vmem:[#allocation5 + $0x48] sm:$0xff]
        %v1562 = vld [vmem:[#allocation5 + $0x50] sm:$0xff]
        %v1563 = vld [vmem:[#allocation5 + $0x58] sm:$0xff]
        %v1564 = vld [vmem:[#allocation5 + $0x60] sm:$0xff]
        %v1565 = vld [vmem:[#allocation5 + $0x68] sm:$0xff]
        %v1566 = vld [vmem:[#allocation5 + $0x70] sm:$0xff]
        %v1567 = vld [vmem:[#allocation5 + $0x78] sm:$0xff]
        %1569 = vset.pattern.permute.xlu0 0
        %1570 = vperm.xlu0 %1569, %v1536
        %v1571 = vpop.permute.xlu0 %1570
        %1574 = vset.pattern.permute.xlu0 0
        %1575 = vperm.xlu0 %1574, %v1537
        %v1576 = vpop.permute.xlu0 %1575
        %1579 = vset.pattern.permute.xlu0 0
        %1580 = vperm.xlu0 %1579, %v1538
        %v1581 = vpop.permute.xlu0 %1580
        %1584 = vset.pattern.permute.xlu0 0
        %1585 = vperm.xlu0 %1584, %v1539
        %v1586 = vpop.permute.xlu0 %1585
        %1589 = vset.pattern.permute.xlu0 0
        %1590 = vperm.xlu0 %1589, %v1540
        %v1591 = vpop.permute.xlu0 %1590
        %1594 = vset.pattern.permute.xlu0 0
        %1595 = vperm.xlu0 %1594, %v1541
        %v1596 = vpop.permute.xlu0 %1595
        %1599 = vset.pattern.permute.xlu0 0
        %1600 = vperm.xlu0 %1599, %v1542
        %v1601 = vpop.permute.xlu0 %1600
        %1604 = vset.pattern.permute.xlu0 0
        %1605 = vperm.xlu0 %1604, %v1543
        %v1606 = vpop.permute.xlu0 %1605
        %1609 = vset.pattern.permute.xlu0 0
        %1610 = vperm.xlu0 %1609, %v1544
        %v1611 = vpop.permute.xlu0 %1610
        %1614 = vset.pattern.permute.xlu0 0
        %1615 = vperm.xlu0 %1614, %v1545
        %v1616 = vpop.permute.xlu0 %1615
        %1619 = vset.pattern.permute.xlu0 0
        %1620 = vperm.xlu0 %1619, %v1546
        %v1621 = vpop.permute.xlu0 %1620
        %1624 = vset.pattern.permute.xlu0 0
        %1625 = vperm.xlu0 %1624, %v1547
        %v1626 = vpop.permute.xlu0 %1625
        %1629 = vset.pattern.permute.xlu0 0
        %1630 = vperm.xlu0 %1629, %v1548
        %v1631 = vpop.permute.xlu0 %1630
        %1634 = vset.pattern.permute.xlu0 0
        %1635 = vperm.xlu0 %1634, %v1549
        %v1636 = vpop.permute.xlu0 %1635
        %1639 = vset.pattern.permute.xlu0 0
        %1640 = vperm.xlu0 %1639, %v1550
        %v1641 = vpop.permute.xlu0 %1640
        %1644 = vset.pattern.permute.xlu0 0
        %1645 = vperm.xlu0 %1644, %v1551
        %v1646 = vpop.permute.xlu0 %1645
        %v1648 = vmul.f32 %v1552, %v1571
        %v1649 = vmul.f32 %v1553, %v1576
        %v1650 = vmul.f32 %v1554, %v1581
        %v1651 = vmul.f32 %v1555, %v1586
        %v1652 = vmul.f32 %v1556, %v1591
        %v1653 = vmul.f32 %v1557, %v1596
        %v1654 = vmul.f32 %v1558, %v1601
        %v1655 = vmul.f32 %v1559, %v1606
        %v1656 = vmul.f32 %v1560, %v1611
        %v1657 = vmul.f32 %v1561, %v1616
        %v1658 = vmul.f32 %v1562, %v1621
        %v1659 = vmul.f32 %v1563, %v1626
        %v1660 = vmul.f32 %v1564, %v1631
        %v1661 = vmul.f32 %v1565, %v1636
        %v1662 = vmul.f32 %v1566, %v1641
        %v1663 = vmul.f32 %v1567, %v1646
        %s1664 = sld [smem:[#allocation6]]
        %v1665 = vstv %s1664
        %v1666 = vmul.f32 %v1665, %v1648
        %v1667 = vmul.f32 %v1665, %v1649
        %v1668 = vmul.f32 %v1665, %v1650
        %v1669 = vmul.f32 %v1665, %v1651
        %v1670 = vmul.f32 %v1665, %v1652
        %v1671 = vmul.f32 %v1665, %v1653
        %v1672 = vmul.f32 %v1665, %v1654
        %v1673 = vmul.f32 %v1665, %v1655
        %v1674 = vmul.f32 %v1665, %v1656
        %v1675 = vmul.f32 %v1665, %v1657
        %v1676 = vmul.f32 %v1665, %v1658
        %v1677 = vmul.f32 %v1665, %v1659
        %v1678 = vmul.f32 %v1665, %v1660
        %v1679 = vmul.f32 %v1665, %v1661
        %v1680 = vmul.f32 %v1665, %v1662
        %v1681 = vmul.f32 %v1665, %v1663
        %v1682 = vld [vmem:[%s340] sm:$0xff]
        %v1683 = vld [vmem:[%s340 + $0x8] sm:$0xff]
        %v1684 = vld [vmem:[%s340 + $0x10] sm:$0xff]
        %v1685 = vld [vmem:[%s340 + $0x18] sm:$0xff]
        %v1686 = vld [vmem:[%s340 + $0x20] sm:$0xff]
        %v1687 = vld [vmem:[%s340 + $0x28] sm:$0xff]
        %v1688 = vld [vmem:[%s340 + $0x30] sm:$0xff]
        %v1689 = vld [vmem:[%s340 + $0x38] sm:$0xff]
        %v1690 = vld [vmem:[%s340 + $0x40] sm:$0xff]
        %v1691 = vld [vmem:[%s340 + $0x48] sm:$0xff]
        %v1692 = vld [vmem:[%s340 + $0x50] sm:$0xff]
        %v1693 = vld [vmem:[%s340 + $0x58] sm:$0xff]
        %v1694 = vld [vmem:[%s340 + $0x60] sm:$0xff]
        %v1695 = vld [vmem:[%s340 + $0x68] sm:$0xff]
        %v1696 = vld [vmem:[%s340 + $0x70] sm:$0xff]
        %v1697 = vld [vmem:[%s340 + $0x78] sm:$0xff]
        %v1698 = vadd.f32 %v1666, %v1682
        %v1699 = vadd.f32 %v1667, %v1683
        %v1700 = vadd.f32 %v1668, %v1684
        %v1701 = vadd.f32 %v1669, %v1685
        %v1702 = vadd.f32 %v1670, %v1686
        %v1703 = vadd.f32 %v1671, %v1687
        %v1704 = vadd.f32 %v1672, %v1688
        %v1705 = vadd.f32 %v1673, %v1689
        %v1706 = vadd.f32 %v1674, %v1690
        %v1707 = vadd.f32 %v1675, %v1691
        %v1708 = vadd.f32 %v1676, %v1692
        %v1709 = vadd.f32 %v1677, %v1693
        %v1710 = vadd.f32 %v1678, %v1694
        %v1711 = vadd.f32 %v1679, %v1695
        %v1712 = vadd.f32 %v1680, %v1696
        %v1713 = vadd.f32 %v1681, %v1697
        %1714 = vst.msk [vmem:[%s360] sm:$0xff] %vm621, %v1698
        %1715 = vst.msk [vmem:[%s360 + $0x8] sm:$0xff] %vm621, %v1699
        %1716 = vst.msk [vmem:[%s360 + $0x10] sm:$0xff] %vm621, %v1700
        %1717 = vst.msk [vmem:[%s360 + $0x18] sm:$0xff] %vm621, %v1701
        %1718 = vst.msk [vmem:[%s360 + $0x20] sm:$0xff] %vm621, %v1702
        %1719 = vst.msk [vmem:[%s360 + $0x28] sm:$0xff] %vm621, %v1703
        %1720 = vst.msk [vmem:[%s360 + $0x30] sm:$0xff] %vm621, %v1704
        %1721 = vst.msk [vmem:[%s360 + $0x38] sm:$0xff] %vm621, %v1705
        %1722 = vst.msk [vmem:[%s360 + $0x40] sm:$0xff] %vm621, %v1706
        %1723 = vst.msk [vmem:[%s360 + $0x48] sm:$0xff] %vm621, %v1707
        %1724 = vst.msk [vmem:[%s360 + $0x50] sm:$0xff] %vm621, %v1708
        %1725 = vst.msk [vmem:[%s360 + $0x58] sm:$0xff] %vm621, %v1709
        %1726 = vst.msk [vmem:[%s360 + $0x60] sm:$0xff] %vm621, %v1710
        %1727 = vst.msk [vmem:[%s360 + $0x68] sm:$0xff] %vm621, %v1711
        %1728 = vst.msk [vmem:[%s360 + $0x70] sm:$0xff] %vm621, %v1712
        %1729 = vst.msk [vmem:[%s360 + $0x78] sm:$0xff] %vm621, %v1713
      $region56: #{tpu_custom_call.1} parent=47 // pred_fallthru
        _
      %s1730 = smul.u32 16, %s25
      %p1731 = scmp.lt.s32.totalorder %s24, 1
      %s1732 = scalar_select %p1731, %s24, 1
      %p1733 = scmp.lt.s32.totalorder %s1730, 31
      %s1734 = scalar_select %p1733, %s1730, 31
      %s1735 = smul.addr %s1732, 32
      %s1736 = sadd.s32 %s1734, %s1735
      %s1737 = smul.addr %s1736, 8
      %s1738 = scalar_lea.vmem %s7, %s1737
      // Predicated region
      $region57: #{tpu_custom_call.1} parent=47 // pred_check
        %p1739 = pneg %p219
      $region58: #{tpu_custom_call.1} parent=47 // pred_check_branch
        %1741 = sbr.rel (%p1739) target = $region60
      $region59: #{tpu_custom_call.1} parent=47 // pred_region
        %s1742 = smul.u32 16, %s25
      $region60: #{tpu_custom_call.1} parent=47 // pred_fallthru
        _
    $region48: #{tpu_custom_call.1} parent=5 // pred_fallthru
      _
    %p1743 = scmp.le.s32.totalorder 2, %s14
    // Predicated region
    $region61: #{tpu_custom_call.1} parent=5 // pred_check
      %p1744 = pneg %p1743
    $region62: #{tpu_custom_call.1} parent=5 // pred_check_branch
      %1746 = sbr.rel (%p1744) target = $region64
    $region63: #{tpu_custom_call.1} parent=5 // pred_region
      %s1747 = ssub.s32 %s14, 2
      // Predicated region
      $region65: #{tpu_custom_call.1} parent=63 // pred_check
        %p1748 = pneg %p225
      $region66: #{tpu_custom_call.1} parent=63 // pred_check_branch
        %1750 = sbr.rel (%p1748) target = $region68
      $region67: #{tpu_custom_call.1} parent=63 // pred_region
        %s1751 = smul.u32 16, %s28
        %p1752 = scmp.lt.s32.totalorder %s27, 1
        %s1753 = scalar_select %p1752, %s27, 1
        %p1754 = scmp.lt.s32.totalorder %s1751, 31
        %s1755 = scalar_select %p1754, %s1751, 31
        %s1756 = smul.addr %s1753, 32
        %s1757 = sadd.s32 %s1755, %s1756
        %s1758 = smul.addr %s1757, 8
        %s1759 = scalar_lea.vmem %s7, %s1758
      $region68: #{tpu_custom_call.1} parent=63 // pred_fallthru
        _
    $region64: #{tpu_custom_call.1} parent=5 // pred_fallthru
      _
  $region6: #{tpu_custom_call.1} parent=0 // loop_footer
    %s18 = sadd.s32 1, %s14
  $region7: #{tpu_custom_call.1} parent=0 // loop_footer_branch
    %13 = sbr.rel target = $region3
  $region8: #{tpu_custom_call.1} parent=0 // loop_exit
    _

</llo_original>
